<compile_context>
chip_gen: v6e
topology: v6e:2x2x1
jax: 0.10.0
libtpu: 0.0.40
codegen_flags: <defaults>
</compile_context>

<pallas_src>
import math
import numpy as np
import jax
import jax.numpy as jnp
from jax import lax
from jax.experimental import pallas as pl
from jax.experimental.pallas import tpu as pltpu

NEG_INF = -1e29
LN_EPS = 1e-5


def _make_mha_kernel(n_head, d_k, d_v, inv_temp, has_mask, return_attn, use_bf16):
    """Fused MHA kernel over grid (batch_block,); heads handled inside the body."""

    def kernel(*refs):
        it = iter(refs)
        q_ref = next(it)                     # (TB, Lq, D)  (also the residual)
        k_ref = next(it)                     # (TB, Lk, D)
        v_ref = next(it)                     # (TB, Lk, D)
        m_ref = next(it) if has_mask else None   # (TB, Lq, Lk) int8
        wq_ref = next(it)                    # (H*d_k, D)
        bq_ref = next(it)                    # (1, H*d_k)
        wk_ref = next(it)                    # (H*d_k, D)
        bk_ref = next(it)                    # (1, H*d_k)
        wv_ref = next(it)                    # (H*d_v, D)
        bv_ref = next(it)                    # (1, H*d_v)
        fcw_ref = next(it)                   # (D, H*d_v)
        fcb_ref = next(it)                   # (1, D)
        g_ref = next(it)                     # (1, D)
        b_ln_ref = next(it)                  # (1, D)
        o_ref = next(it)                     # (TB, Lq, D)
        a_ref = next(it) if return_attn else None   # (H, TB, Lq, Lk)

        TB, Lq, D = q_ref.shape
        Lk = k_ref.shape[1]
        mm = jnp.bfloat16 if use_bf16 else jnp.float32

        def dot_nt(a, b):
            # (M, K) x (N, K) -> (M, N): contract shared last dims; no transpose materialized.
            return lax.dot_general(
                a.astype(mm), b.astype(mm),
                dimension_numbers=(((1,), (1,)), ((), ())),
                preferred_element_type=jnp.float32)

        xq2 = q_ref[...].reshape(TB * Lq, D)
        xk2 = k_ref[...].reshape(TB * Lk, D)
        xv2 = v_ref[...].reshape(TB * Lk, D)

        # All-head projections: single MXU matmuls with M = TB*L rows, N = H*d.
        Q = (dot_nt(xq2, wq_ref[...]) + bq_ref[...]).reshape(TB, Lq, n_head * d_k)
        K = (dot_nt(xk2, wk_ref[...]) + bk_ref[...]).reshape(TB, Lk, n_head * d_k)
        V = (dot_nt(xv2, wv_ref[...]) + bv_ref[...]).reshape(TB, Lk, n_head * d_v)

        if has_mask:
            mask_b = m_ref[...] != 0          # decoded once, shared by all heads

        ctx_parts = []
        for h in range(n_head):               # statically unrolled over heads
            qh = Q[:, :, h * d_k:(h + 1) * d_k]       # (TB, Lq, d_k)
            kh = K[:, :, h * d_k:(h + 1) * d_k]       # (TB, Lk, d_k)
            vh = V[:, :, h * d_v:(h + 1) * d_v]       # (TB, Lk, d_v)

            s = jnp.einsum('bqd,bkd->bqk', qh.astype(mm), kh.astype(mm),
                           preferred_element_type=jnp.float32) * inv_temp
            if has_mask:
                s = jnp.where(mask_b, NEG_INF, s)

            m = jnp.max(s, axis=-1, keepdims=True)
            e = jnp.exp(s - m)
            denom = jnp.sum(e, axis=-1, keepdims=True)

            if return_attn:
                p = e / denom                              # exact probs for HBM writeback
                a_ref[h] = p.astype(a_ref.dtype)           # (TB, Lq, Lk) into head slot h
            else:
                p = e * pl.reciprocal(denom, approx=True)  # EUP vrcp, output path only

            ctx_parts.append(jnp.einsum('bqk,bkd->bqd', p.astype(mm), vh.astype(mm),
                                        preferred_element_type=jnp.float32))

        # One fc matmul contracting H*d_v (lane/K-dense), + bias + residual.
        ctx2 = jnp.concatenate(ctx_parts, axis=-1).reshape(TB * Lq, n_head * d_v)
        out = dot_nt(ctx2, fcw_ref[...]) + fcb_ref[...] + xq2

        # LayerNorm over the model dimension.
        mu = jnp.mean(out, axis=-1, keepdims=True)
        c = out - mu
        var = jnp.mean(c * c, axis=-1, keepdims=True)
        out = g_ref[...] * (c * lax.rsqrt(var + LN_EPS)) + b_ln_ref[...]

        o_ref[...] = out.reshape(TB, Lq, D).astype(o_ref.dtype)

    return kernel


def multi_head_attention(params, q, k, v, mask=None, return_attn=True,
                         block_b=None, use_bf16_matmul=False):
    """q: (B, Lq, D), k/v: (B, Lk, D), mask: optional bool/int (B, Lq, Lk)."""
    n_head = params["n_head"]
    d_k = params["d_k"]
    d_v = params["d_v"]
    B, Lq, d_model = q.shape
    Lk = k.shape[1]
    inv_temp = 1.0 / math.sqrt(d_k)
    has_mask = mask is not None

    # Pick batch-block size: aim for >=128 flattened rows per step while keeping >=2 grid
    # steps (so v7x's two TensorCores both get work); must divide B.
    if block_b is None:
        block_b = min(B, max(1, 128 // max(Lq, 1)))
        if B >= 2 and B // max(block_b, 1) < 2:
            block_b = max(1, B // 2)
    while block_b > 1 and B % block_b != 0:
        block_b -= 1
    nb = B // block_b

    # Weights/biases passed untiled (constant index_map -> loaded once, resident in VMEM).
    wq = params["w_qs_w"]                                  # (H*d_k, D)
    wk = params["w_ks_w"]
    wv = params["w_vs_w"]                                  # (H*d_v, D)
    bq = params["w_qs_b"].reshape(1, n_head * d_k)
    bk = params["w_ks_b"].reshape(1, n_head * d_k)
    bv = params["w_vs_b"].reshape(1, n_head * d_v)
    fcw = params["fc_w"]                                   # (D, H*d_v)
    fcb = params["fc_b"].reshape(1, d_model)
    lng = params["ln_g"].reshape(1, d_model)
    lnb = params["ln_b"].reshape(1, d_model)

    in_specs = [
        pl.BlockSpec((block_b, Lq, d_model), lambda b: (b, 0, 0)),   # q (also residual)
        pl.BlockSpec((block_b, Lk, d_model), lambda b: (b, 0, 0)),   # k
        pl.BlockSpec((block_b, Lk, d_model), lambda b: (b, 0, 0)),   # v
    ]
    inputs = [q, k, v]
    if has_mask:
        in_specs.append(pl.BlockSpec((block_b, Lq, Lk), lambda b: (b, 0, 0)))
        inputs.append(mask.astype(jnp.int8))               # shared across heads, int8
    in_specs += [
        pl.BlockSpec((n_head * d_k, d_model), lambda b: (0, 0)),     # wq (all heads)
        pl.BlockSpec((1, n_head * d_k), lambda b: (0, 0)),           # bq
        pl.BlockSpec((n_head * d_k, d_model), lambda b: (0, 0)),     # wk
        pl.BlockSpec((1, n_head * d_k), lambda b: (0, 0)),           # bk
        pl.BlockSpec((n_head * d_v, d_model), lambda b: (0, 0)),     # wv
        pl.BlockSpec((1, n_head * d_v), lambda b: (0, 0)),           # bv
        pl.BlockSpec((d_model, n_head * d_v), lambda b: (0, 0)),     # fc weight
        pl.BlockSpec((1, d_model), lambda b: (0, 0)),                # fc bias
        pl.BlockSpec((1, d_model), lambda b: (0, 0)),                # ln gamma
        pl.BlockSpec((1, d_model), lambda b: (0, 0)),                # ln beta
    ]
    inputs += [wq, bq, wk, bk, wv, bv, fcw, fcb, lng, lnb]

    out_shapes = [jax.ShapeDtypeStruct((B, Lq, d_model), jnp.float32)]
    out_specs = [pl.BlockSpec((block_b, Lq, d_model), lambda b: (b, 0, 0))]
    if return_attn:
        # (H, B, Lq, Lk): head-major so the wrapper reshape to (H*B, Lq, Lk) is contiguous.
        out_shapes.append(jax.ShapeDtypeStruct((n_head, B, Lq, Lk), jnp.float32))
        out_specs.append(pl.BlockSpec((n_head, block_b, Lq, Lk), lambda b: (0, b, 0, 0)))

    kernel = _make_mha_kernel(n_head, d_k, d_v, inv_temp, has_mask, return_attn,
                              use_bf16_matmul)

    outs = pl.pallas_call(
        kernel,
        out_shape=tuple(out_shapes),
        grid_spec=pltpu.PrefetchScalarGridSpec(
            num_scalar_prefetch=0,
            grid=(nb,),                                    # batch blocks only
            in_specs=in_specs,
            out_specs=tuple(out_specs),
        ),
        compiler_params=pltpu.CompilerParams(
            dimension_semantics=("parallel",),
            vmem_limit_bytes=64 * 1024 * 1024),
    )(*inputs)

    if return_attn:
        out, attn4 = outs
        attn = attn4.reshape(n_head * B, Lq, Lk)           # head-major (h*B + b), contiguous
        return out, attn
    (out,) = outs
    return out, None


# ---------------------------------------------------------------------------
# Pure-JAX reference (mirrors the torch module, eval mode)
# ---------------------------------------------------------------------------
def reference(params, q, k, v, mask=None):
    n_head, d_k, d_v = params["n_head"], params["d_k"], params["d_v"]
    sz_b, len_q, d_model = q.shape
    len_k = k.shape[1]
    residual = q
    lin = lambda x, w, b: x @ w.T + b
    qh = lin(q, params["w_qs_w"], params["w_qs_b"]).reshape(sz_b, len_q, n_head, d_k)
    kh = lin(k, params["w_ks_w"], params["w_ks_b"]).reshape(sz_b, len_k, n_head, d_k)
    vh = lin(v, params["w_vs_w"], params["w_vs_b"]).reshape(sz_b, len_k, n_head, d_v)
    qh = qh.transpose(2, 0, 1, 3).reshape(-1, len_q, d_k)
    kh = kh.transpose(2, 0, 1, 3).reshape(-1, len_k, d_k)
    vh = vh.transpose(2, 0, 1, 3).reshape(-1, len_k, d_v)
    s = jnp.einsum("bqd,bkd->bqk", qh, kh) / math.sqrt(d_k)
    if mask is not None:
        s = jnp.where(jnp.tile(mask, (n_head, 1, 1)), NEG_INF, s)
    attn = jax.nn.softmax(s, axis=-1)
    out = jnp.einsum("bqk,bkd->bqd", attn, vh)
    out = out.reshape(n_head, sz_b, len_q, d_v).transpose(1, 2, 0, 3).reshape(sz_b, len_q, -1)
    out = out @ params["fc_w"].T + params["fc_b"] + residual
    mean = out.mean(-1, keepdims=True)
    var = ((out - mean) ** 2).mean(-1, keepdims=True)
    out = params["ln_g"] * (out - mean) / jnp.sqrt(var + LN_EPS) + params["ln_b"]
    return out, attn


if __name__ == "__main__":
    # small config: n_head=2, d_model=32, d_k=16, d_v=16, batch=2, seq=8
    n_head, d_model, d_k, d_v = 2, 32, 16, 16
    sz_b, len_q, len_k = 2, 8, 8

    key = jax.random.PRNGKey(0)
    ks = jax.random.split(key, 12)

    params = {
        "n_head": n_head, "d_k": d_k, "d_v": d_v,
        "w_qs_w": (jax.random.normal(ks[0], (n_head * d_k, d_model)) * np.sqrt(2.0 / (d_model + d_k))).astype(jnp.float32),
        "w_ks_w": (jax.random.normal(ks[1], (n_head * d_k, d_model)) * np.sqrt(2.0 / (d_model + d_k))).astype(jnp.float32),
        "w_vs_w": (jax.random.normal(ks[2], (n_head * d_v, d_model)) * np.sqrt(2.0 / (d_model + d_v))).astype(jnp.float32),
        "w_qs_b": (jax.random.normal(ks[3], (n_head * d_k,)) * 0.02).astype(jnp.float32),
        "w_ks_b": (jax.random.normal(ks[4], (n_head * d_k,)) * 0.02).astype(jnp.float32),
        "w_vs_b": (jax.random.normal(ks[5], (n_head * d_v,)) * 0.02).astype(jnp.float32),
        "fc_w": (jax.random.normal(ks[6], (d_model, n_head * d_v)) * np.sqrt(2.0 / (d_model + n_head * d_v))).astype(jnp.float32),
        "fc_b": (jax.random.normal(ks[7], (d_model,)) * 0.02).astype(jnp.float32),
        "ln_g": jnp.ones((d_model,), jnp.float32),
        "ln_b": jnp.zeros((d_model,), jnp.float32),
    }

    q = jax.random.normal(ks[8], (sz_b, len_q, d_model), jnp.float32)
    k = jax.random.normal(ks[9], (sz_b, len_k, d_model), jnp.float32)
    v = jax.random.normal(ks[10], (sz_b, len_k, d_model), jnp.float32)

    # --- case 1: no mask ---
    out, attn = multi_head_attention(params, q, k, v, mask=None)
    out = jax.block_until_ready(out)
    attn = jax.block_until_ready(attn)
    ref_out, ref_attn = reference(params, q, k, v, mask=None)
    assert out.shape == (sz_b, len_q, d_model)
    assert attn.shape == (n_head * sz_b, len_q, len_k)
    np.testing.assert_allclose(np.asarray(out), np.asarray(ref_out), rtol=2e-2, atol=2e-3)
    np.testing.assert_allclose(np.asarray(attn), np.asarray(ref_attn), rtol=2e-2, atol=2e-3)

    # --- case 2: boolean mask shared across heads ---
    mask = jax.random.uniform(ks[11], (sz_b, len_q, len_k)) < 0.3
    out_m, attn_m = multi_head_attention(params, q, k, v, mask=mask)
    out_m = jax.block_until_ready(out_m)
    attn_m = jax.block_until_ready(attn_m)
    ref_out_m, ref_attn_m = reference(params, q, k, v, mask=mask)
    np.testing.assert_allclose(np.asarray(out_m), np.asarray(ref_out_m), rtol=2e-2, atol=2e-3)
    np.testing.assert_allclose(np.asarray(attn_m), np.asarray(ref_attn_m), rtol=2e-2, atol=2e-3)

    # --- case 3: caller does not need attention probabilities (skip their writeback) ---
    out_only, attn_none = multi_head_attention(params, q, k, v, mask=mask, return_attn=False)
    out_only = jax.block_until_ready(out_only)
    assert attn_none is None
    np.testing.assert_allclose(np.asarray(out_only), np.asarray(ref_out_m), rtol=2e-2, atol=2e-3)

    # --- case 4: multiple batch items per grid step (blocked batch path) ---
    out_b2, attn_b2 = multi_head_attention(params, q, k, v, mask=mask, block_b=2)
    out_b2 = jax.block_until_ready(out_b2)
    attn_b2 = jax.block_until_ready(attn_b2)
    np.testing.assert_allclose(np.asarray(out_b2), np.asarray(ref_out_m), rtol=2e-2, atol=2e-3)
    np.testing.assert_allclose(np.asarray(attn_b2), np.asarray(ref_attn_m), rtol=2e-2, atol=2e-3)

    print("KERNEL_OK")
</pallas_src>

<mosaic_0001>
module attributes {stable_mosaic.version = 11 : i64} {
  func.func @kernel(%arg0: i32, %arg1: memref<1x8x32xf32, #tpu.memory_space<vmem>>, %arg2: memref<1x8x32xf32, #tpu.memory_space<vmem>>, %arg3: memref<1x8x32xf32, #tpu.memory_space<vmem>>, %arg4: memref<32x32xf32, #tpu.memory_space<vmem>>, %arg5: memref<1x32xf32, #tpu.memory_space<vmem>>, %arg6: memref<32x32xf32, #tpu.memory_space<vmem>>, %arg7: memref<1x32xf32, #tpu.memory_space<vmem>>, %arg8: memref<32x32xf32, #tpu.memory_space<vmem>>, %arg9: memref<1x32xf32, #tpu.memory_space<vmem>>, %arg10: memref<32x32xf32, #tpu.memory_space<vmem>>, %arg11: memref<1x32xf32, #tpu.memory_space<vmem>>, %arg12: memref<1x32xf32, #tpu.memory_space<vmem>>, %arg13: memref<1x32xf32, #tpu.memory_space<vmem>>, %arg14: memref<1x8x32xf32, #tpu.memory_space<vmem>>, %arg15: memref<2x1x8x8xf32, #tpu.memory_space<vmem>>) attributes {dimension_semantics = [#tpu.dimension_semantics<parallel>], iteration_bounds = array<i64: 2>, scalar_prefetch = 0 : i64, scratch_operands = 0 : i64, tpu.core_type = #tpu.core_type<tc>, window_params = [{transform_indices = @transform_0, window_bounds = array<i64: 1, 8, 32>}, {transform_indices = @transform_1, window_bounds = array<i64: 1, 8, 32>}, {transform_indices = @transform_2, window_bounds = array<i64: 1, 8, 32>}, {pipeline_mode = #tpu.pipeline_mode<synchronous>, transform_indices = @transform_3, window_bounds = array<i64: 32, 32>}, {pipeline_mode = #tpu.pipeline_mode<synchronous>, transform_indices = @transform_4, window_bounds = array<i64: 1, 32>}, {pipeline_mode = #tpu.pipeline_mode<synchronous>, transform_indices = @transform_5, window_bounds = array<i64: 32, 32>}, {pipeline_mode = #tpu.pipeline_mode<synchronous>, transform_indices = @transform_6, window_bounds = array<i64: 1, 32>}, {pipeline_mode = #tpu.pipeline_mode<synchronous>, transform_indices = @transform_7, window_bounds = array<i64: 32, 32>}, {pipeline_mode = #tpu.pipeline_mode<synchronous>, transform_indices = @transform_8, window_bounds = array<i64: 1, 32>}, {pipeline_mode = #tpu.pipeline_mode<synchronous>, transform_indices = @transform_9, window_bounds = array<i64: 32, 32>}, {pipeline_mode = #tpu.pipeline_mode<synchronous>, transform_indices = @transform_10, window_bounds = array<i64: 1, 32>}, {pipeline_mode = #tpu.pipeline_mode<synchronous>, transform_indices = @transform_11, window_bounds = array<i64: 1, 32>}, {pipeline_mode = #tpu.pipeline_mode<synchronous>, transform_indices = @transform_12, window_bounds = array<i64: 1, 32>}, {transform_indices = @transform_13, window_bounds = array<i64: 1, 8, 32>}, {transform_indices = @transform_14, window_bounds = array<i64: 2, 1, 8, 8>}]} {
    %c0 = arith.constant 0 : index
    %c0_0 = arith.constant 0 : index
    %c0_1 = arith.constant 0 : index
    %0 = vector.load %arg1[%c0, %c0_0, %c0_1] : memref<1x8x32xf32, #tpu.memory_space<vmem>>, vector<1x8x32xf32>
    %1 = vector.shape_cast %0 : vector<1x8x32xf32> to vector<8x32xf32>
    %c0_2 = arith.constant 0 : index
    %c0_3 = arith.constant 0 : index
    %c0_4 = arith.constant 0 : index
    %2 = vector.load %arg2[%c0_2, %c0_3, %c0_4] : memref<1x8x32xf32, #tpu.memory_space<vmem>>, vector<1x8x32xf32>
    %3 = vector.shape_cast %2 : vector<1x8x32xf32> to vector<8x32xf32>
    %c0_5 = arith.constant 0 : index
    %c0_6 = arith.constant 0 : index
    %c0_7 = arith.constant 0 : index
    %4 = vector.load %arg3[%c0_5, %c0_6, %c0_7] : memref<1x8x32xf32, #tpu.memory_space<vmem>>, vector<1x8x32xf32>
    %5 = vector.shape_cast %4 : vector<1x8x32xf32> to vector<8x32xf32>
    %c0_8 = arith.constant 0 : index
    %c0_9 = arith.constant 0 : index
    %6 = vector.load %arg4[%c0_8, %c0_9] : memref<32x32xf32, #tpu.memory_space<vmem>>, vector<32x32xf32>
    %cst = arith.constant dense<0.000000e+00> : vector<8x32xf32>
    %7 = tpu.matmul %1, %6, %cst {dimension_numbers = #tpu.dot_dimension_numbers<[1], [1], [0], [0], [0, 0, 1, 0], [], []>} : vector<8x32xf32>, vector<32x32xf32>, vector<8x32xf32> -> vector<8x32xf32>
    %c0_10 = arith.constant 0 : index
    %c0_11 = arith.constant 0 : index
    %8 = vector.load %arg5[%c0_10, %c0_11] : memref<1x32xf32, #tpu.memory_space<vmem>>, vector<1x32xf32>
    %9 = vector.broadcast %8 : vector<1x32xf32> to vector<8x32xf32>
    %10 = arith.addf %7, %9 : vector<8x32xf32>
    %11 = vector.shape_cast %10 : vector<8x32xf32> to vector<1x8x32xf32>
    %c0_12 = arith.constant 0 : index
    %c0_13 = arith.constant 0 : index
    %12 = vector.load %arg6[%c0_12, %c0_13] : memref<32x32xf32, #tpu.memory_space<vmem>>, vector<32x32xf32>
    %cst_14 = arith.constant dense<0.000000e+00> : vector<8x32xf32>
    %13 = tpu.matmul %3, %12, %cst_14 {dimension_numbers = #tpu.dot_dimension_numbers<[1], [1], [0], [0], [0, 0, 1, 0], [], []>} : vector<8x32xf32>, vector<32x32xf32>, vector<8x32xf32> -> vector<8x32xf32>
    %c0_15 = arith.constant 0 : index
    %c0_16 = arith.constant 0 : index
    %14 = vector.load %arg7[%c0_15, %c0_16] : memref<1x32xf32, #tpu.memory_space<vmem>>, vector<1x32xf32>
    %15 = vector.broadcast %14 : vector<1x32xf32> to vector<8x32xf32>
    %16 = arith.addf %13, %15 : vector<8x32xf32>
    %17 = vector.shape_cast %16 : vector<8x32xf32> to vector<1x8x32xf32>
    %c0_17 = arith.constant 0 : index
    %c0_18 = arith.constant 0 : index
    %18 = vector.load %arg8[%c0_17, %c0_18] : memref<32x32xf32, #tpu.memory_space<vmem>>, vector<32x32xf32>
    %cst_19 = arith.constant dense<0.000000e+00> : vector<8x32xf32>
    %19 = tpu.matmul %5, %18, %cst_19 {dimension_numbers = #tpu.dot_dimension_numbers<[1], [1], [0], [0], [0, 0, 1, 0], [], []>} : vector<8x32xf32>, vector<32x32xf32>, vector<8x32xf32> -> vector<8x32xf32>
    %c0_20 = arith.constant 0 : index
    %c0_21 = arith.constant 0 : index
    %20 = vector.load %arg9[%c0_20, %c0_21] : memref<1x32xf32, #tpu.memory_space<vmem>>, vector<1x32xf32>
    %21 = vector.broadcast %20 : vector<1x32xf32> to vector<8x32xf32>
    %22 = arith.addf %19, %21 : vector<8x32xf32>
    %23 = vector.shape_cast %22 : vector<8x32xf32> to vector<1x8x32xf32>
    %24 = vector.extract_strided_slice %11 {offsets = [0, 0, 0], sizes = [1, 8, 16], strides = [1, 1, 1]} : vector<1x8x32xf32> to vector<1x8x16xf32>
    %25 = vector.extract_strided_slice %17 {offsets = [0, 0, 0], sizes = [1, 8, 16], strides = [1, 1, 1]} : vector<1x8x32xf32> to vector<1x8x16xf32>
    %26 = vector.extract_strided_slice %23 {offsets = [0, 0, 0], sizes = [1, 8, 16], strides = [1, 1, 1]} : vector<1x8x32xf32> to vector<1x8x16xf32>
    "tpu.trace_start"() <{level = 10 : i32, message = "bqd,bkd->bqk"}> : () -> ()
    %cst_22 = arith.constant dense<0.000000e+00> : vector<1x8x8xf32>
    %27 = tpu.matmul %24, %25, %cst_22 {dimension_numbers = #tpu.dot_dimension_numbers<[2], [2], [1], [1], [0, 0, 0, 1, 1, 1], [0], [0]>} : vector<1x8x16xf32>, vector<1x8x16xf32>, vector<1x8x8xf32> -> vector<1x8x8xf32>
    "tpu.trace_stop"() : () -> ()
    %cst_23 = arith.constant 2.500000e-01 : f32
    %28 = vector.broadcast %cst_23 : f32 to vector<1x8x8xf32>
    %29 = arith.mulf %27, %28 : vector<1x8x8xf32>
    %cst_24 = arith.constant dense<0xFF800000> : vector<1x8xf32>
    %30 = vector.multi_reduction <maximumf>, %29, %cst_24 [2] : vector<1x8x8xf32> to vector<1x8xf32>
    %31 = vector.shape_cast %30 : vector<1x8xf32> to vector<1x8x1xf32>
    %32 = vector.broadcast %31 : vector<1x8x1xf32> to vector<1x8x8xf32>
    %33 = arith.subf %29, %32 : vector<1x8x8xf32>
    %34 = math.exp %33 : vector<1x8x8xf32>
    %cst_25 = arith.constant dense<0.000000e+00> : vector<1x8xf32>
    %35 = vector.multi_reduction <add>, %34, %cst_25 [2] : vector<1x8x8xf32> to vector<1x8xf32>
    %36 = vector.shape_cast %35 : vector<1x8xf32> to vector<1x8x1xf32>
    %37 = vector.broadcast %36 : vector<1x8x1xf32> to vector<1x8x8xf32>
    %38 = arith.divf %34, %37 : vector<1x8x8xf32>
    %c0_26 = arith.constant 0 : index
    %c0_27 = arith.constant 0 : index
    %c0_28 = arith.constant 0 : index
    %c0_29 = arith.constant 0 : index
    %39 = vector.load %arg15[%c0_26, %c0_27, %c0_28, %c0_29] : memref<2x1x8x8xf32, #tpu.memory_space<vmem>>, vector<1x1x8x8xf32>
    %40 = vector.shape_cast %39 : vector<1x1x8x8xf32> to vector<1x8x8xf32>
    %41 = vector.shape_cast %38 : vector<1x8x8xf32> to vector<1x1x8x8xf32>
    tpu.vector_store %arg15[%c0_26, %c0_27, %c0_28, %c0_29], %41 {strides = array<i32>} : memref<2x1x8x8xf32, #tpu.memory_space<vmem>>, vector<1x1x8x8xf32>,
    "tpu.trace_start"() <{level = 10 : i32, message = "bqk,bkd->bqd"}> : () -> ()
    %cst_30 = arith.constant dense<0.000000e+00> : vector<1x8x16xf32>
    %42 = tpu.matmul %38, %26, %cst_30 {dimension_numbers = #tpu.dot_dimension_numbers<[2], [1], [1], [2], [0, 0, 0, 1, 1, 2], [0], [0]>} : vector<1x8x8xf32>, vector<1x8x16xf32>, vector<1x8x16xf32> -> vector<1x8x16xf32>
    "tpu.trace_stop"() : () -> ()
    %43 = vector.extract_strided_slice %11 {offsets = [0, 0, 16], sizes = [1, 8, 16], strides = [1, 1, 1]} : vector<1x8x32xf32> to vector<1x8x16xf32>
    %44 = vector.extract_strided_slice %17 {offsets = [0, 0, 16], sizes = [1, 8, 16], strides = [1, 1, 1]} : vector<1x8x32xf32> to vector<1x8x16xf32>
    %45 = vector.extract_strided_slice %23 {offsets = [0, 0, 16], sizes = [1, 8, 16], strides = [1, 1, 1]} : vector<1x8x32xf32> to vector<1x8x16xf32>
    "tpu.trace_start"() <{level = 10 : i32, message = "bqd,bkd->bqk"}> : () -> ()
    %cst_31 = arith.constant dense<0.000000e+00> : vector<1x8x8xf32>
    %46 = tpu.matmul %43, %44, %cst_31 {dimension_numbers = #tpu.dot_dimension_numbers<[2], [2], [1], [1], [0, 0, 0, 1, 1, 1], [0], [0]>} : vector<1x8x16xf32>, vector<1x8x16xf32>, vector<1x8x8xf32> -> vector<1x8x8xf32>
    "tpu.trace_stop"() : () -> ()
    %cst_32 = arith.constant 2.500000e-01 : f32
    %47 = vector.broadcast %cst_32 : f32 to vector<1x8x8xf32>
    %48 = arith.mulf %46, %47 : vector<1x8x8xf32>
    %cst_33 = arith.constant dense<0xFF800000> : vector<1x8xf32>
    %49 = vector.multi_reduction <maximumf>, %48, %cst_33 [2] : vector<1x8x8xf32> to vector<1x8xf32>
    %50 = vector.shape_cast %49 : vector<1x8xf32> to vector<1x8x1xf32>
    %51 = vector.broadcast %50 : vector<1x8x1xf32> to vector<1x8x8xf32>
    %52 = arith.subf %48, %51 : vector<1x8x8xf32>
    %53 = math.exp %52 : vector<1x8x8xf32>
    %cst_34 = arith.constant dense<0.000000e+00> : vector<1x8xf32>
    %54 = vector.multi_reduction <add>, %53, %cst_34 [2] : vector<1x8x8xf32> to vector<1x8xf32>
    %55 = vector.shape_cast %54 : vector<1x8xf32> to vector<1x8x1xf32>
    %56 = vector.broadcast %55 : vector<1x8x1xf32> to vector<1x8x8xf32>
    %57 = arith.divf %53, %56 : vector<1x8x8xf32>
    %c1 = arith.constant 1 : index
    %c0_35 = arith.constant 0 : index
    %c0_36 = arith.constant 0 : index
    %c0_37 = arith.constant 0 : index
    %58 = vector.load %arg15[%c1, %c0_35, %c0_36, %c0_37] : memref<2x1x8x8xf32, #tpu.memory_space<vmem>>, vector<1x1x8x8xf32>
    %59 = vector.shape_cast %58 : vector<1x1x8x8xf32> to vector<1x8x8xf32>
    %60 = vector.shape_cast %57 : vector<1x8x8xf32> to vector<1x1x8x8xf32>
    tpu.vector_store %arg15[%c1, %c0_35, %c0_36, %c0_37], %60 {strides = array<i32>} : memref<2x1x8x8xf32, #tpu.memory_space<vmem>>, vector<1x1x8x8xf32>,
    "tpu.trace_start"() <{level = 10 : i32, message = "bqk,bkd->bqd"}> : () -> ()
    %cst_38 = arith.constant dense<0.000000e+00> : vector<1x8x16xf32>
    %61 = tpu.matmul %57, %45, %cst_38 {dimension_numbers = #tpu.dot_dimension_numbers<[2], [1], [1], [2], [0, 0, 0, 1, 1, 2], [0], [0]>} : vector<1x8x8xf32>, vector<1x8x16xf32>, vector<1x8x16xf32> -> vector<1x8x16xf32>
    "tpu.trace_stop"() : () -> ()
    %62 = tpu.concatenate %42, %61 in 2 : vector<1x8x16xf32>, vector<1x8x16xf32> -> vector<1x8x32xf32>
    %63 = vector.shape_cast %62 : vector<1x8x32xf32> to vector<8x32xf32>
    %c0_39 = arith.constant 0 : index
    %c0_40 = arith.constant 0 : index
    %64 = vector.load %arg10[%c0_39, %c0_40] : memref<32x32xf32, #tpu.memory_space<vmem>>, vector<32x32xf32>
    %cst_41 = arith.constant dense<0.000000e+00> : vector<8x32xf32>
    %65 = tpu.matmul %63, %64, %cst_41 {dimension_numbers = #tpu.dot_dimension_numbers<[1], [1], [0], [0], [0, 0, 1, 0], [], []>} : vector<8x32xf32>, vector<32x32xf32>, vector<8x32xf32> -> vector<8x32xf32>
    %c0_42 = arith.constant 0 : index
    %c0_43 = arith.constant 0 : index
    %66 = vector.load %arg11[%c0_42, %c0_43] : memref<1x32xf32, #tpu.memory_space<vmem>>, vector<1x32xf32>
    %67 = vector.broadcast %66 : vector<1x32xf32> to vector<8x32xf32>
    %68 = arith.addf %65, %67 : vector<8x32xf32>
    %69 = arith.addf %68, %1 : vector<8x32xf32>
    %cst_44 = arith.constant dense<0.000000e+00> : vector<8xf32>
    %70 = vector.multi_reduction <add>, %69, %cst_44 [1] : vector<8x32xf32> to vector<8xf32>
    %71 = vector.shape_cast %70 : vector<8xf32> to vector<8x1xf32>
    %cst_45 = arith.constant 3.200000e+01 : f32
    %72 = vector.broadcast %cst_45 : f32 to vector<8x1xf32>
    %73 = arith.divf %71, %72 : vector<8x1xf32>
    %74 = vector.broadcast %73 : vector<8x1xf32> to vector<8x32xf32>
    %75 = arith.subf %69, %74 : vector<8x32xf32>
    %76 = arith.mulf %75, %75 : vector<8x32xf32>
    %cst_46 = arith.constant dense<0.000000e+00> : vector<8xf32>
    %77 = vector.multi_reduction <add>, %76, %cst_46 [1] : vector<8x32xf32> to vector<8xf32>
    %78 = vector.shape_cast %77 : vector<8xf32> to vector<8x1xf32>
    %cst_47 = arith.constant 3.200000e+01 : f32
    %79 = vector.broadcast %cst_47 : f32 to vector<8x1xf32>
    %80 = arith.divf %78, %79 : vector<8x1xf32>
    %c0_48 = arith.constant 0 : index
    %c0_49 = arith.constant 0 : index
    %81 = vector.load %arg12[%c0_48, %c0_49] : memref<1x32xf32, #tpu.memory_space<vmem>>, vector<1x32xf32>
    %cst_50 = arith.constant 9.99999974E-6 : f32
    %82 = vector.broadcast %cst_50 : f32 to vector<8x1xf32>
    %83 = arith.addf %80, %82 : vector<8x1xf32>
    %84 = math.rsqrt %83 : vector<8x1xf32>
    %85 = vector.broadcast %84 : vector<8x1xf32> to vector<8x32xf32>
    %86 = arith.mulf %75, %85 : vector<8x32xf32>
    %87 = vector.broadcast %81 : vector<1x32xf32> to vector<8x32xf32>
    %88 = arith.mulf %87, %86 : vector<8x32xf32>
    %c0_51 = arith.constant 0 : index
    %c0_52 = arith.constant 0 : index
    %89 = vector.load %arg13[%c0_51, %c0_52] : memref<1x32xf32, #tpu.memory_space<vmem>>, vector<1x32xf32>
    %90 = vector.broadcast %89 : vector<1x32xf32> to vector<8x32xf32>
    %91 = arith.addf %88, %90 : vector<8x32xf32>
    %92 = vector.shape_cast %91 : vector<8x32xf32> to vector<1x8x32xf32>
    %c0_53 = arith.constant 0 : index
    %c0_54 = arith.constant 0 : index
    %c0_55 = arith.constant 0 : index
    %93 = vector.load %arg14[%c0_53, %c0_54, %c0_55] : memref<1x8x32xf32, #tpu.memory_space<vmem>>, vector<1x8x32xf32>
    tpu.vector_store %arg14[%c0_53, %c0_54, %c0_55], %92 {strides = array<i32>} : memref<1x8x32xf32, #tpu.memory_space<vmem>>, vector<1x8x32xf32>,
    return
  }
  func.func @transform_0(%arg0: i32) -> (i32, i32, i32) {
    %c0_i32 = arith.constant 0 : i32
    %c0_i32_0 = arith.constant 0 : i32
    %c0_i32_1 = arith.constant 0 : i32
    return %arg0, %c0_i32, %c0_i32_0 : i32, i32, i32
  }
  func.func @transform_1(%arg0: i32) -> (i32, i32, i32) {
    %c0_i32 = arith.constant 0 : i32
    %c0_i32_0 = arith.constant 0 : i32
    %c0_i32_1 = arith.constant 0 : i32
    return %arg0, %c0_i32, %c0_i32_0 : i32, i32, i32
  }
  func.func @transform_2(%arg0: i32) -> (i32, i32, i32) {
    %c0_i32 = arith.constant 0 : i32
    %c0_i32_0 = arith.constant 0 : i32
    %c0_i32_1 = arith.constant 0 : i32
    return %arg0, %c0_i32, %c0_i32_0 : i32, i32, i32
  }
  func.func @transform_3(%arg0: i32) -> (i32, i32) {
    %c0_i32 = arith.constant 0 : i32
    %c0_i32_0 = arith.constant 0 : i32
    %c0_i32_1 = arith.constant 0 : i32
    return %c0_i32, %c0_i32_0 : i32, i32
  }
  func.func @transform_4(%arg0: i32) -> (i32, i32) {
    %c0_i32 = arith.constant 0 : i32
    %c0_i32_0 = arith.constant 0 : i32
    %c0_i32_1 = arith.constant 0 : i32
    return %c0_i32, %c0_i32_0 : i32, i32
  }
  func.func @transform_5(%arg0: i32) -> (i32, i32) {
    %c0_i32 = arith.constant 0 : i32
    %c0_i32_0 = arith.constant 0 : i32
    %c0_i32_1 = arith.constant 0 : i32
    return %c0_i32, %c0_i32_0 : i32, i32
  }
  func.func @transform_6(%arg0: i32) -> (i32, i32) {
    %c0_i32 = arith.constant 0 : i32
    %c0_i32_0 = arith.constant 0 : i32
    %c0_i32_1 = arith.constant 0 : i32
    return %c0_i32, %c0_i32_0 : i32, i32
  }
  func.func @transform_7(%arg0: i32) -> (i32, i32) {
    %c0_i32 = arith.constant 0 : i32
    %c0_i32_0 = arith.constant 0 : i32
    %c0_i32_1 = arith.constant 0 : i32
    return %c0_i32, %c0_i32_0 : i32, i32
  }
  func.func @transform_8(%arg0: i32) -> (i32, i32) {
    %c0_i32 = arith.constant 0 : i32
    %c0_i32_0 = arith.constant 0 : i32
    %c0_i32_1 = arith.constant 0 : i32
    return %c0_i32, %c0_i32_0 : i32, i32
  }
  func.func @transform_9(%arg0: i32) -> (i32, i32) {
    %c0_i32 = arith.constant 0 : i32
    %c0_i32_0 = arith.constant 0 : i32
    %c0_i32_1 = arith.constant 0 : i32
    return %c0_i32, %c0_i32_0 : i32, i32
  }
  func.func @transform_10(%arg0: i32) -> (i32, i32) {
    %c0_i32 = arith.constant 0 : i32
    %c0_i32_0 = arith.constant 0 : i32
    %c0_i32_1 = arith.constant 0 : i32
    return %c0_i32, %c0_i32_0 : i32, i32
  }
  func.func @transform_11(%arg0: i32) -> (i32, i32) {
    %c0_i32 = arith.constant 0 : i32
    %c0_i32_0 = arith.constant 0 : i32
    %c0_i32_1 = arith.constant 0 : i32
    return %c0_i32, %c0_i32_0 : i32, i32
  }
  func.func @transform_12(%arg0: i32) -> (i32, i32) {
    %c0_i32 = arith.constant 0 : i32
    %c0_i32_0 = arith.constant 0 : i32
    %c0_i32_1 = arith.constant 0 : i32
    return %c0_i32, %c0_i32_0 : i32, i32
  }
  func.func @transform_13(%arg0: i32) -> (i32, i32, i32) {
    %c0_i32 = arith.constant 0 : i32
    %c0_i32_0 = arith.constant 0 : i32
    %c0_i32_1 = arith.constant 0 : i32
    return %arg0, %c0_i32, %c0_i32_0 : i32, i32, i32
  }
  func.func @transform_14(%arg0: i32) -> (i32, i32, i32, i32) {
    %c0_i32 = arith.constant 0 : i32
    %c0_i32_0 = arith.constant 0 : i32
    %c0_i32_1 = arith.constant 0 : i32
    %c0_i32_2 = arith.constant 0 : i32
    return %c0_i32, %arg0, %c0_i32_0, %c0_i32_1 : i32, i32, i32, i32
  }
}

</mosaic_0001>

<llo_original>
// kernel: tpu_custom_call.1
$region0: #{tpu_custom_call.1}
  #allocation0 [shape = 'u32[]', space=smem, size = 0x4, offset = 0x4, fixed_abs, tag = 'smem constant byte address 0x4 - core index']
  #allocation1 [shape = 'u32[144,128]{1,0:T(1,128)}', space=vmem, size = 0x12000, scoped, tag = 'internal scratch']
  %s0 = inlined_call_operand.hbm [shape: f32[2,8,32], index: 0, kind: input, shape index: {}]
  %s1 = inlined_call_operand.hbm [shape: f32[2,8,32], index: 1, kind: input, shape index: {}]
  %s2 = inlined_call_operand.hbm [shape: f32[2,8,32], index: 2, kind: input, shape index: {}]
  %s3 = inlined_call_operand.hbm [shape: f32[32,32], index: 3, kind: input, shape index: {}]
  %s4 = inlined_call_operand.vmem [shape: f32[1,32], index: 4, kind: input, shape index: {}]
  %s5 = inlined_call_operand.hbm [shape: f32[32,32], index: 5, kind: input, shape index: {}]
  %s6 = inlined_call_operand.vmem [shape: f32[1,32], index: 6, kind: input, shape index: {}]
  %s7 = inlined_call_operand.hbm [shape: f32[32,32], index: 7, kind: input, shape index: {}]
  %s8 = inlined_call_operand.vmem [shape: f32[1,32], index: 8, kind: input, shape index: {}]
  %s9 = inlined_call_operand.hbm [shape: f32[32,32], index: 9, kind: input, shape index: {}]
  %s10 = inlined_call_operand.vmem [shape: f32[1,32], index: 10, kind: input, shape index: {}]
  %s11 = inlined_call_operand.vmem [shape: f32[1,32], index: 11, kind: input, shape index: {}]
  %s12 = inlined_call_operand.vmem [shape: f32[1,32], index: 12, kind: input, shape index: {}]
  %s13 = inlined_call_operand.hbm [shape: f32[2,8,32], index: 13, kind: output, shape index: {0}]
  %s14 = inlined_call_operand.hbm [shape: f32[2,2,8,8], index: 14, kind: output, shape index: {1}]
  %15 = xla_tuple %s13, %s14
  %s16 = sld [smem:[#allocation0]]
  $region121: #{tpu_custom_call.1} parent=0
    _
  %s18 = ssub.s32 1, %s16
  %s19 = scalar_select 0, %s18, %s16
  $region1: #{tpu_custom_call.1} parent=0
    #allocation2 [shape = 'u8[8192]{0}', space=vmem, size = 0x2000, scoped, tag = 'input window, operand 0']
    #allocation3 [shape = 's32[2]{0}', space=sflag, size = 0x8, scoped, tag = 'scoped memory for tpu_custom_call.1']
    #allocation4 [shape = 's32[2]{0}', space=sflag, size = 0x8, scoped, tag = 'scoped memory for tpu_custom_call.1']
    #allocation5 [shape = 'u8[8192]{0}', space=vmem, size = 0x2000, scoped, tag = 'input window, operand 1']
    #allocation6 [shape = 's32[2]{0}', space=sflag, size = 0x8, scoped, tag = 'scoped memory for tpu_custom_call.1']
    #allocation7 [shape = 'u8[8192]{0}', space=vmem, size = 0x2000, scoped, tag = 'input window, operand 2']
    #allocation8 [shape = 'u8[16384]{0}', space=vmem, size = 0x4000, scoped, tag = 'input window, operand 3, single buffered']
    #allocation9 [shape = 's32[1]{0}', space=sflag, size = 0x4, scoped, tag = 'scoped memory for tpu_custom_call.1']
    #allocation10 [shape = 'u8[16384]{0}', space=vmem, size = 0x4000, scoped, tag = 'input window, operand 5, single buffered']
    #allocation11 [shape = 'u8[16384]{0}', space=vmem, size = 0x4000, scoped, tag = 'input window, operand 7, single buffered']
    #allocation12 [shape = 's32[1]{0}', space=sflag, size = 0x4, scoped, tag = 'scoped memory for tpu_custom_call.1']
    #allocation13 [shape = 'u8[16384]{0}', space=vmem, size = 0x4000, scoped, tag = 'input window, operand 9, single buffered']
    #allocation14 [shape = 'u8[8192]{0}', space=vmem, size = 0x2000, scoped, tag = 'output window, operand 0']
    #allocation15 [shape = 'u8[16384]{0}', space=vmem, size = 0x4000, scoped, tag = 'output window, operand 1']
    #allocation16 [shape = 's32[2]{0}', space=sflag, size = 0x8, scoped, tag = 'scoped memory for tpu_custom_call.1']
    %20 = vsyncpa [#allocation3], 0
    %s21 = scalar_lea.sflag [#allocation3], 1
    %22 = vsyncpa %s21, 0
    %23 = vsyncpa [#allocation6], 0
    %s24 = scalar_lea.sflag [#allocation6], 1
    %25 = vsyncpa %s24, 0
    %26 = vsyncpa [#allocation9], 0
    %27 = vsyncpa [#allocation12], 0
    %28 = vsyncpa [#allocation4], 0
    %s29 = scalar_lea.sflag [#allocation4], 1
    %30 = vsyncpa %s29, 0
    %31 = vsyncpa [#allocation16], 0
    %s32 = scalar_lea.sflag [#allocation16], 1
    %33 = vsyncpa %s32, 0
    loop: start=0, step=1, limit=4
    $region2: #{tpu_custom_call.1} parent=1 // loop_pre_header
      _
    $region3: #{tpu_custom_call.1} parent=1 // loop_header
      %s35 = sphi 0, %s39
      %p36 = scmp.ge.s32.totalorder %s35, 4
      %s45 = sphi 0, %s47
      %s48 = sphi 0, %s45
      %s49 = sphi 0, %s48
      %s65 = sphi 0, %s49
      %s71 = sphi 0, %s73
      %s74 = sphi 0, %s71
      %s75 = sphi 0, %s74
      %s91 = sphi 0, %s75
      %s97 = sphi 0, %s99
      %s100 = sphi 0, %s97
      %s101 = sphi 0, %s100
      %s117 = sphi 0, %s101
      %s121 = sphi 0, %s121
      %s123 = sphi 0, %s121
      %s124 = sphi 0, %s123
      %s138 = sphi 0, %s124
      %s142 = sphi 0, %s142
      %s144 = sphi 0, %s142
      %s145 = sphi 0, %s144
      %s159 = sphi 0, %s145
      %s163 = sphi 0, %s163
      %s165 = sphi 0, %s163
      %s166 = sphi 0, %s165
      %s180 = sphi 0, %s166
      %s184 = sphi 0, %s184
      %s186 = sphi 0, %s184
      %s187 = sphi 0, %s186
      %s201 = sphi 0, %s187
      %s205 = sphi 0, %s205
      %s207 = sphi 0, %s205
      %s208 = sphi 0, %s207
      %s222 = sphi 0, %s208
      %s226 = sphi 0, %s226
      %s228 = sphi 0, %s226
      %s229 = sphi 0, %s228
      %s243 = sphi 0, %s229
      %s247 = sphi 0, %s247
      %s249 = sphi 0, %s247
      %s250 = sphi 0, %s249
      %s264 = sphi 0, %s250
      %s268 = sphi 0, %s268
      %s270 = sphi 0, %s268
      %s271 = sphi 0, %s270
      %s285 = sphi 0, %s271
      %s289 = sphi 0, %s289
      %s291 = sphi 0, %s289
      %s292 = sphi 0, %s291
      %s306 = sphi 0, %s292
      %s310 = sphi 0, %s310
      %s312 = sphi 0, %s310
      %s313 = sphi 0, %s312
      %s327 = sphi 0, %s313
      %s333 = sphi 0, %s335
      %s336 = sphi 0, %s333
      %s337 = sphi 0, %s336
      %s353 = sphi 0, %s337
      %s359 = sphi 0, %s361
      %s362 = sphi 0, %s359
      %s363 = sphi 0, %s362
      %s379 = sphi 0, %s363
    $region4: #{tpu_custom_call.1} parent=1 // loop_header_branch
      %38 = sbr.rel (%p36) target = $region8
    $region5: #{tpu_custom_call.1} parent=1 // loop_body
      %s40 = ssub.s32 %s35, 1
      %s41 = ssub.s32 %s35, 2
      %s42 = sadd.s32 %s35, 1
      %s43 = ssub.s32 %s35, %s42
      %p44 = scmp.eq.s32.totalorder %s43, 0
      %s46 = sadd.s32 %s45, 1
      %s47 = scalar_select %p44, %s45, %s46
      %p50 = pneg %p44
      %p51 = scmp.eq.s32.totalorder %s35, 1
      %p52 = por %p50, %p51
      %p53 = scmp.ne.s32.totalorder %s45, %s48
      %p54 = scmp.eq.s32.totalorder %s35, 0
      %p55 = por %p53, %p54
      %p56 = scmp.ne.s32.totalorder %s45, %s48
      %p57 = scmp.eq.s32.totalorder %s40, 1
      %p58 = por %p56, %p57
      %p59 = scmp.ne.s32.totalorder %s48, %s49
      %p60 = scmp.eq.s32.totalorder %s40, 0
      %p61 = por %p59, %p60
      %p62 = scmp.ne.s32.totalorder %s48, %s49
      %p63 = scmp.eq.s32.totalorder %s41, 1
      %p64 = por %p62, %p63
      %p66 = scmp.ne.s32.totalorder %s49, %s65
      %p67 = scmp.eq.s32.totalorder %s41, 0
      %p68 = por %p66, %p67
      %s69 = ssub.s32 %s35, %s42
      %p70 = scmp.eq.s32.totalorder %s69, 0
      %s72 = sadd.s32 %s71, 1
      %s73 = scalar_select %p70, %s71, %s72
      %p76 = pneg %p70
      %p77 = scmp.eq.s32.totalorder %s35, 1
      %p78 = por %p76, %p77
      %p79 = scmp.ne.s32.totalorder %s71, %s74
      %p80 = scmp.eq.s32.totalorder %s35, 0
      %p81 = por %p79, %p80
      %p82 = scmp.ne.s32.totalorder %s71, %s74
      %p83 = scmp.eq.s32.totalorder %s40, 1
      %p84 = por %p82, %p83
      %p85 = scmp.ne.s32.totalorder %s74, %s75
      %p86 = scmp.eq.s32.totalorder %s40, 0
      %p87 = por %p85, %p86
      %p88 = scmp.ne.s32.totalorder %s74, %s75
      %p89 = scmp.eq.s32.totalorder %s41, 1
      %p90 = por %p88, %p89
      %p92 = scmp.ne.s32.totalorder %s75, %s91
      %p93 = scmp.eq.s32.totalorder %s41, 0
      %p94 = por %p92, %p93
      %s95 = ssub.s32 %s35, %s42
      %p96 = scmp.eq.s32.totalorder %s95, 0
      %s98 = sadd.s32 %s97, 1
      %s99 = scalar_select %p96, %s97, %s98
      %p102 = pneg %p96
      %p103 = scmp.eq.s32.totalorder %s35, 1
      %p104 = por %p102, %p103
      %p105 = scmp.ne.s32.totalorder %s97, %s100
      %p106 = scmp.eq.s32.totalorder %s35, 0
      %p107 = por %p105, %p106
      %p108 = scmp.ne.s32.totalorder %s97, %s100
      %p109 = scmp.eq.s32.totalorder %s40, 1
      %p110 = por %p108, %p109
      %p111 = scmp.ne.s32.totalorder %s100, %s101
      %p112 = scmp.eq.s32.totalorder %s40, 0
      %p113 = por %p111, %p112
      %p114 = scmp.ne.s32.totalorder %s100, %s101
      %p115 = scmp.eq.s32.totalorder %s41, 1
      %p116 = por %p114, %p115
      %p118 = scmp.ne.s32.totalorder %s101, %s117
      %p119 = scmp.eq.s32.totalorder %s41, 0
      %p120 = por %p118, %p119
      %s122 = sadd.s32 %s121, 1
      %p125 = scmp.eq.s32.totalorder %s35, 1
      %p126 = scmp.ne.s32.totalorder %s121, %s123
      %p127 = scmp.eq.s32.totalorder %s35, 0
      %p128 = por %p126, %p127
      %p129 = scmp.ne.s32.totalorder %s121, %s123
      %p130 = scmp.eq.s32.totalorder %s40, 1
      %p131 = por %p129, %p130
      %p132 = scmp.ne.s32.totalorder %s123, %s124
      %p133 = scmp.eq.s32.totalorder %s40, 0
      %p134 = por %p132, %p133
      %p135 = scmp.ne.s32.totalorder %s123, %s124
      %p136 = scmp.eq.s32.totalorder %s41, 1
      %p137 = por %p135, %p136
      %p139 = scmp.ne.s32.totalorder %s124, %s138
      %p140 = scmp.eq.s32.totalorder %s41, 0
      %p141 = por %p139, %p140
      %s143 = sadd.s32 %s142, 1
      %p146 = scmp.eq.s32.totalorder %s35, 1
      %p147 = scmp.ne.s32.totalorder %s142, %s144
      %p148 = scmp.eq.s32.totalorder %s35, 0
      %p149 = por %p147, %p148
      %p150 = scmp.ne.s32.totalorder %s142, %s144
      %p151 = scmp.eq.s32.totalorder %s40, 1
      %p152 = por %p150, %p151
      %p153 = scmp.ne.s32.totalorder %s144, %s145
      %p154 = scmp.eq.s32.totalorder %s40, 0
      %p155 = por %p153, %p154
      %p156 = scmp.ne.s32.totalorder %s144, %s145
      %p157 = scmp.eq.s32.totalorder %s41, 1
      %p158 = por %p156, %p157
      %p160 = scmp.ne.s32.totalorder %s145, %s159
      %p161 = scmp.eq.s32.totalorder %s41, 0
      %p162 = por %p160, %p161
      %s164 = sadd.s32 %s163, 1
      %p167 = scmp.eq.s32.totalorder %s35, 1
      %p168 = scmp.ne.s32.totalorder %s163, %s165
      %p169 = scmp.eq.s32.totalorder %s35, 0
      %p170 = por %p168, %p169
      %p171 = scmp.ne.s32.totalorder %s163, %s165
      %p172 = scmp.eq.s32.totalorder %s40, 1
      %p173 = por %p171, %p172
      %p174 = scmp.ne.s32.totalorder %s165, %s166
      %p175 = scmp.eq.s32.totalorder %s40, 0
      %p176 = por %p174, %p175
      %p177 = scmp.ne.s32.totalorder %s165, %s166
      %p178 = scmp.eq.s32.totalorder %s41, 1
      %p179 = por %p177, %p178
      %p181 = scmp.ne.s32.totalorder %s166, %s180
      %p182 = scmp.eq.s32.totalorder %s41, 0
      %p183 = por %p181, %p182
      %s185 = sadd.s32 %s184, 1
      %p188 = scmp.eq.s32.totalorder %s35, 1
      %p189 = scmp.ne.s32.totalorder %s184, %s186
      %p190 = scmp.eq.s32.totalorder %s35, 0
      %p191 = por %p189, %p190
      %p192 = scmp.ne.s32.totalorder %s184, %s186
      %p193 = scmp.eq.s32.totalorder %s40, 1
      %p194 = por %p192, %p193
      %p195 = scmp.ne.s32.totalorder %s186, %s187
      %p196 = scmp.eq.s32.totalorder %s40, 0
      %p197 = por %p195, %p196
      %p198 = scmp.ne.s32.totalorder %s186, %s187
      %p199 = scmp.eq.s32.totalorder %s41, 1
      %p200 = por %p198, %p199
      %p202 = scmp.ne.s32.totalorder %s187, %s201
      %p203 = scmp.eq.s32.totalorder %s41, 0
      %p204 = por %p202, %p203
      %s206 = sadd.s32 %s205, 1
      %p209 = scmp.eq.s32.totalorder %s35, 1
      %p210 = scmp.ne.s32.totalorder %s205, %s207
      %p211 = scmp.eq.s32.totalorder %s35, 0
      %p212 = por %p210, %p211
      %p213 = scmp.ne.s32.totalorder %s205, %s207
      %p214 = scmp.eq.s32.totalorder %s40, 1
      %p215 = por %p213, %p214
      %p216 = scmp.ne.s32.totalorder %s207, %s208
      %p217 = scmp.eq.s32.totalorder %s40, 0
      %p218 = por %p216, %p217
      %p219 = scmp.ne.s32.totalorder %s207, %s208
      %p220 = scmp.eq.s32.totalorder %s41, 1
      %p221 = por %p219, %p220
      %p223 = scmp.ne.s32.totalorder %s208, %s222
      %p224 = scmp.eq.s32.totalorder %s41, 0
      %p225 = por %p223, %p224
      %s227 = sadd.s32 %s226, 1
      %p230 = scmp.eq.s32.totalorder %s35, 1
      %p231 = scmp.ne.s32.totalorder %s226, %s228
      %p232 = scmp.eq.s32.totalorder %s35, 0
      %p233 = por %p231, %p232
      %p234 = scmp.ne.s32.totalorder %s226, %s228
      %p235 = scmp.eq.s32.totalorder %s40, 1
      %p236 = por %p234, %p235
      %p237 = scmp.ne.s32.totalorder %s228, %s229
      %p238 = scmp.eq.s32.totalorder %s40, 0
      %p239 = por %p237, %p238
      %p240 = scmp.ne.s32.totalorder %s228, %s229
      %p241 = scmp.eq.s32.totalorder %s41, 1
      %p242 = por %p240, %p241
      %p244 = scmp.ne.s32.totalorder %s229, %s243
      %p245 = scmp.eq.s32.totalorder %s41, 0
      %p246 = por %p244, %p245
      %s248 = sadd.s32 %s247, 1
      %p251 = scmp.eq.s32.totalorder %s35, 1
      %p252 = scmp.ne.s32.totalorder %s247, %s249
      %p253 = scmp.eq.s32.totalorder %s35, 0
      %p254 = por %p252, %p253
      %p255 = scmp.ne.s32.totalorder %s247, %s249
      %p256 = scmp.eq.s32.totalorder %s40, 1
      %p257 = por %p255, %p256
      %p258 = scmp.ne.s32.totalorder %s249, %s250
      %p259 = scmp.eq.s32.totalorder %s40, 0
      %p260 = por %p258, %p259
      %p261 = scmp.ne.s32.totalorder %s249, %s250
      %p262 = scmp.eq.s32.totalorder %s41, 1
      %p263 = por %p261, %p262
      %p265 = scmp.ne.s32.totalorder %s250, %s264
      %p266 = scmp.eq.s32.totalorder %s41, 0
      %p267 = por %p265, %p266
      %s269 = sadd.s32 %s268, 1
      %p272 = scmp.eq.s32.totalorder %s35, 1
      %p273 = scmp.ne.s32.totalorder %s268, %s270
      %p274 = scmp.eq.s32.totalorder %s35, 0
      %p275 = por %p273, %p274
      %p276 = scmp.ne.s32.totalorder %s268, %s270
      %p277 = scmp.eq.s32.totalorder %s40, 1
      %p278 = por %p276, %p277
      %p279 = scmp.ne.s32.totalorder %s270, %s271
      %p280 = scmp.eq.s32.totalorder %s40, 0
      %p281 = por %p279, %p280
      %p282 = scmp.ne.s32.totalorder %s270, %s271
      %p283 = scmp.eq.s32.totalorder %s41, 1
      %p284 = por %p282, %p283
      %p286 = scmp.ne.s32.totalorder %s271, %s285
      %p287 = scmp.eq.s32.totalorder %s41, 0
      %p288 = por %p286, %p287
      %s290 = sadd.s32 %s289, 1
      %p293 = scmp.eq.s32.totalorder %s35, 1
      %p294 = scmp.ne.s32.totalorder %s289, %s291
      %p295 = scmp.eq.s32.totalorder %s35, 0
      %p296 = por %p294, %p295
      %p297 = scmp.ne.s32.totalorder %s289, %s291
      %p298 = scmp.eq.s32.totalorder %s40, 1
      %p299 = por %p297, %p298
      %p300 = scmp.ne.s32.totalorder %s291, %s292
      %p301 = scmp.eq.s32.totalorder %s40, 0
      %p302 = por %p300, %p301
      %p303 = scmp.ne.s32.totalorder %s291, %s292
      %p304 = scmp.eq.s32.totalorder %s41, 1
      %p305 = por %p303, %p304
      %p307 = scmp.ne.s32.totalorder %s292, %s306
      %p308 = scmp.eq.s32.totalorder %s41, 0
      %p309 = por %p307, %p308
      %s311 = sadd.s32 %s310, 1
      %p314 = scmp.eq.s32.totalorder %s35, 1
      %p315 = scmp.ne.s32.totalorder %s310, %s312
      %p316 = scmp.eq.s32.totalorder %s35, 0
      %p317 = por %p315, %p316
      %p318 = scmp.ne.s32.totalorder %s310, %s312
      %p319 = scmp.eq.s32.totalorder %s40, 1
      %p320 = por %p318, %p319
      %p321 = scmp.ne.s32.totalorder %s312, %s313
      %p322 = scmp.eq.s32.totalorder %s40, 0
      %p323 = por %p321, %p322
      %p324 = scmp.ne.s32.totalorder %s312, %s313
      %p325 = scmp.eq.s32.totalorder %s41, 1
      %p326 = por %p324, %p325
      %p328 = scmp.ne.s32.totalorder %s313, %s327
      %p329 = scmp.eq.s32.totalorder %s41, 0
      %p330 = por %p328, %p329
      %s331 = ssub.s32 %s35, %s42
      %p332 = scmp.eq.s32.totalorder %s331, 0
      %s334 = sadd.s32 %s333, 1
      %s335 = scalar_select %p332, %s333, %s334
      %p338 = pneg %p332
      %p339 = scmp.eq.s32.totalorder %s35, 1
      %p340 = por %p338, %p339
      %p341 = scmp.ne.s32.totalorder %s333, %s336
      %p342 = scmp.eq.s32.totalorder %s35, 0
      %p343 = por %p341, %p342
      %p344 = scmp.ne.s32.totalorder %s333, %s336
      %p345 = scmp.eq.s32.totalorder %s40, 1
      %p346 = por %p344, %p345
      %p347 = scmp.ne.s32.totalorder %s336, %s337
      %p348 = scmp.eq.s32.totalorder %s40, 0
      %p349 = por %p347, %p348
      %p350 = scmp.ne.s32.totalorder %s336, %s337
      %p351 = scmp.eq.s32.totalorder %s41, 1
      %p352 = por %p350, %p351
      %p354 = scmp.ne.s32.totalorder %s337, %s353
      %p355 = scmp.eq.s32.totalorder %s41, 0
      %p356 = por %p354, %p355
      %s357 = ssub.s32 %s35, %s42
      %p358 = scmp.eq.s32.totalorder %s357, 0
      %s360 = sadd.s32 %s359, 1
      %s361 = scalar_select %p358, %s359, %s360
      %p364 = pneg %p358
      %p365 = scmp.eq.s32.totalorder %s35, 1
      %p366 = por %p364, %p365
      %p367 = scmp.ne.s32.totalorder %s359, %s362
      %p368 = scmp.eq.s32.totalorder %s35, 0
      %p369 = por %p367, %p368
      %p370 = scmp.ne.s32.totalorder %s359, %s362
      %p371 = scmp.eq.s32.totalorder %s40, 1
      %p372 = por %p370, %p371
      %p373 = scmp.ne.s32.totalorder %s362, %s363
      %p374 = scmp.eq.s32.totalorder %s40, 0
      %p375 = por %p373, %p374
      %p376 = scmp.ne.s32.totalorder %s362, %s363
      %p377 = scmp.eq.s32.totalorder %s41, 1
      %p378 = por %p376, %p377
      %p380 = scmp.ne.s32.totalorder %s363, %s379
      %p381 = scmp.eq.s32.totalorder %s41, 0
      %p382 = por %p380, %p381
      %p383 = scmp.le.s32.totalorder 1, %s35
      %p384 = scmp.lt.s32.totalorder %s35, 3
      %p385 = pnand %p383, %p384
      %p386 = pneg %p385
      // Predicated region
      $region9: #{tpu_custom_call.1} parent=5 // pred_check
        _
      $region10: #{tpu_custom_call.1} parent=5 // pred_check_branch
        %388 = sbr.rel (%p385) target = $region12
      $region11: #{tpu_custom_call.1} parent=5 // pred_region
        %s389 = ssub.s32 %s35, 1
        // Predicated region
        $region13: #{tpu_custom_call.1} parent=11 // pred_check
          %p390 = pneg %p134
        $region14: #{tpu_custom_call.1} parent=11 // pred_check_branch
          %392 = sbr.rel (%p390) target = $region16
        $region15: #{tpu_custom_call.1} parent=11 // pred_region
          %s394 = ssub.s32 512, 512
          %395 = vsyncadd [#allocation9], %s394
          %s396 = sshll.u32 [#allocation8], 4
          %s397 = int_to_ptr.vmem [resolvable:$true] %s396
          %402 = dma.hbm_to_vmem [thread:$0]  %s3, 512, %s397, [#allocation9], 128, 128, 8
        $region16: #{tpu_custom_call.1} parent=11 // pred_fallthru
          _
        // Predicated region
        $region17: #{tpu_custom_call.1} parent=11 // pred_check
          %p403 = pneg %p155
        $region18: #{tpu_custom_call.1} parent=11 // pred_check_branch
          %405 = sbr.rel (%p403) target = $region20
        $region19: #{tpu_custom_call.1} parent=11 // pred_region
          _
        $region20: #{tpu_custom_call.1} parent=11 // pred_fallthru
          _
        // Predicated region
        $region21: #{tpu_custom_call.1} parent=11 // pred_check
          %p406 = pneg %p176
        $region22: #{tpu_custom_call.1} parent=11 // pred_check_branch
          %408 = sbr.rel (%p406) target = $region24
        $region23: #{tpu_custom_call.1} parent=11 // pred_region
          %s410 = ssub.s32 512, 512
          %411 = vsyncadd [#allocation9], %s410
          %s412 = sshll.u32 [#allocation10], 4
          %s413 = int_to_ptr.vmem [resolvable:$true] %s412
          %418 = dma.hbm_to_vmem [thread:$0]  %s5, 512, %s413, [#allocation9], 128, 128, 8
        $region24: #{tpu_custom_call.1} parent=11 // pred_fallthru
          _
        // Predicated region
        $region25: #{tpu_custom_call.1} parent=11 // pred_check
          %p419 = pneg %p197
        $region26: #{tpu_custom_call.1} parent=11 // pred_check_branch
          %421 = sbr.rel (%p419) target = $region28
        $region27: #{tpu_custom_call.1} parent=11 // pred_region
          _
        $region28: #{tpu_custom_call.1} parent=11 // pred_fallthru
          _
        // Predicated region
        $region29: #{tpu_custom_call.1} parent=11 // pred_check
          %p422 = pneg %p218
        $region30: #{tpu_custom_call.1} parent=11 // pred_check_branch
          %424 = sbr.rel (%p422) target = $region32
        $region31: #{tpu_custom_call.1} parent=11 // pred_region
          %s426 = ssub.s32 512, 512
          %427 = vsyncadd [#allocation12], %s426
          %s428 = sshll.u32 [#allocation11], 4
          %s429 = int_to_ptr.vmem [resolvable:$true] %s428
          %434 = dma.hbm_to_vmem [thread:$0]  %s7, 512, %s429, [#allocation12], 128, 128, 8
        $region32: #{tpu_custom_call.1} parent=11 // pred_fallthru
          _
        // Predicated region
        $region33: #{tpu_custom_call.1} parent=11 // pred_check
          %p435 = pneg %p239
        $region34: #{tpu_custom_call.1} parent=11 // pred_check_branch
          %437 = sbr.rel (%p435) target = $region36
        $region35: #{tpu_custom_call.1} parent=11 // pred_region
          _
        $region36: #{tpu_custom_call.1} parent=11 // pred_fallthru
          _
        // Predicated region
        $region37: #{tpu_custom_call.1} parent=11 // pred_check
          %p438 = pneg %p260
        $region38: #{tpu_custom_call.1} parent=11 // pred_check_branch
          %440 = sbr.rel (%p438) target = $region40
        $region39: #{tpu_custom_call.1} parent=11 // pred_region
          %s442 = ssub.s32 512, 512
          %443 = vsyncadd [#allocation12], %s442
          %s444 = sshll.u32 [#allocation13], 4
          %s445 = int_to_ptr.vmem [resolvable:$true] %s444
          %450 = dma.hbm_to_vmem [thread:$0]  %s9, 512, %s445, [#allocation12], 128, 128, 8
        $region40: #{tpu_custom_call.1} parent=11 // pred_fallthru
          _
        // Predicated region
        $region41: #{tpu_custom_call.1} parent=11 // pred_check
          %p451 = pneg %p281
        $region42: #{tpu_custom_call.1} parent=11 // pred_check_branch
          %453 = sbr.rel (%p451) target = $region44
        $region43: #{tpu_custom_call.1} parent=11 // pred_region
          _
        $region44: #{tpu_custom_call.1} parent=11 // pred_fallthru
          _
        // Predicated region
        $region45: #{tpu_custom_call.1} parent=11 // pred_check
          %p454 = pneg %p302
        $region46: #{tpu_custom_call.1} parent=11 // pred_check_branch
          %456 = sbr.rel (%p454) target = $region48
        $region47: #{tpu_custom_call.1} parent=11 // pred_region
          _
        $region48: #{tpu_custom_call.1} parent=11 // pred_fallthru
          _
        // Predicated region
        $region49: #{tpu_custom_call.1} parent=11 // pred_check
          %p457 = pneg %p323
        $region50: #{tpu_custom_call.1} parent=11 // pred_check_branch
          %459 = sbr.rel (%p457) target = $region52
        $region51: #{tpu_custom_call.1} parent=11 // pred_region
          _
        $region52: #{tpu_custom_call.1} parent=11 // pred_fallthru
          _
      $region12: #{tpu_custom_call.1} parent=5 // pred_fallthru
        _
      %p460 = scmp.lt.s32.totalorder %s35, 2
      // Predicated region
      $region53: #{tpu_custom_call.1} parent=5 // pred_check
        %p461 = pneg %p460
      $region54: #{tpu_custom_call.1} parent=5 // pred_check_branch
        %463 = sbr.rel (%p461) target = $region56
      $region55: #{tpu_custom_call.1} parent=5 // pred_region
        // Predicated region
        $region57: #{tpu_custom_call.1} parent=55 // pred_check
          %p464 = pneg %p55
        $region58: #{tpu_custom_call.1} parent=55 // pred_check_branch
          %466 = sbr.rel (%p464) target = $region60
        $region59: #{tpu_custom_call.1} parent=55 // pred_region
          %s467 = sand.u32 %s45, 1
          %s468 = scalar_lea.sflag [#allocation3], %s467
          %s469 = sand.u32 %s45, 1
          %s470 = smul.addr %s469, 8
          %s471 = scalar_lea.vmem [#allocation2], %s470
          %s473 = ssub.s32 128, 128
          %474 = vsyncadd %s468, %s473
          %s475 = smul.addr %s35, 128
          %s476 = scalar_lea.hbm %s0, %s475
          %s478 = sshll.u32 %s471, 4
          %s479 = int_to_ptr.vmem [resolvable:$true] %s478
          %481 = dma.hbm_to_vmem [thread:$0]  %s476, 128, %s479, %s468
        $region60: #{tpu_custom_call.1} parent=55 // pred_fallthru
          _
        // Predicated region
        $region61: #{tpu_custom_call.1} parent=55 // pred_check
          %p482 = pneg %p81
        $region62: #{tpu_custom_call.1} parent=55 // pred_check_branch
          %484 = sbr.rel (%p482) target = $region64
        $region63: #{tpu_custom_call.1} parent=55 // pred_region
          %s485 = sand.u32 %s35, 1
          %s486 = scalar_lea.sflag [#allocation6], %s485
          %s487 = sand.u32 %s71, 1
          %s488 = smul.addr %s487, 8
          %s489 = scalar_lea.vmem [#allocation5], %s488
          %s491 = ssub.s32 128, 128
          %492 = vsyncadd %s486, %s491
          %s493 = smul.addr %s35, 128
          %s494 = scalar_lea.hbm %s1, %s493
          %s496 = sshll.u32 %s489, 4
          %s497 = int_to_ptr.vmem [resolvable:$true] %s496
          %499 = dma.hbm_to_vmem [thread:$0]  %s494, 128, %s497, %s486
        $region64: #{tpu_custom_call.1} parent=55 // pred_fallthru
          _
        // Predicated region
        $region65: #{tpu_custom_call.1} parent=55 // pred_check
          %p500 = pneg %p107
        $region66: #{tpu_custom_call.1} parent=55 // pred_check_branch
          %502 = sbr.rel (%p500) target = $region68
        $region67: #{tpu_custom_call.1} parent=55 // pred_region
          %s503 = sand.u32 %s35, 1
          %s504 = scalar_lea.sflag [#allocation6], %s503
          %s505 = sand.u32 %s97, 1
          %s506 = smul.addr %s505, 8
          %s507 = scalar_lea.vmem [#allocation7], %s506
          %s509 = ssub.s32 128, 128
          %510 = vsyncadd %s504, %s509
          %s511 = smul.addr %s35, 128
          %s512 = scalar_lea.hbm %s2, %s511
          %s514 = sshll.u32 %s507, 4
          %s515 = int_to_ptr.vmem [resolvable:$true] %s514
          %517 = dma.hbm_to_vmem [thread:$0]  %s512, 128, %s515, %s504
        $region68: #{tpu_custom_call.1} parent=55 // pred_fallthru
          _
      $region56: #{tpu_custom_call.1} parent=5 // pred_fallthru
        _
      %p518 = scmp.le.s32.totalorder 1, %s35
      %p519 = scmp.lt.s32.totalorder %s35, 3
      %p520 = pnand %p518, %p519
      %p521 = pneg %p520
      // Predicated region
      $region69: #{tpu_custom_call.1} parent=5 // pred_check
        _
      $region70: #{tpu_custom_call.1} parent=5 // pred_check_branch
        %523 = sbr.rel (%p520) target = $region72
      $region71: #{tpu_custom_call.1} parent=5 // pred_region
        %s524 = ssub.s32 %s35, 1
        %s525 = sand.u32 %s48, 1
        %s526 = scalar_lea.sflag [#allocation3], %s525
        %s527 = sand.u32 %s48, 1
        %s528 = smul.addr %s527, 8
        %s529 = scalar_lea.vmem [#allocation2], %s528
        // Predicated region
        $region73: #{tpu_custom_call.1} parent=71 // pred_check
          %p530 = pneg %p61
        $region74: #{tpu_custom_call.1} parent=71 // pred_check_branch
          %532 = sbr.rel (%p530) target = $region76
        $region75: #{tpu_custom_call.1} parent=71 // pred_region
          %533 = dma.done %s526, 128
        $region76: #{tpu_custom_call.1} parent=71 // pred_fallthru
          _
        %s534 = sand.u32 %s40, 1
        %s535 = scalar_lea.sflag [#allocation6], %s534
        %s536 = sand.u32 %s74, 1
        %s537 = smul.addr %s536, 8
        %s538 = scalar_lea.vmem [#allocation5], %s537
        // Predicated region
        $region77: #{tpu_custom_call.1} parent=71 // pred_check
          %p539 = pneg %p87
        $region78: #{tpu_custom_call.1} parent=71 // pred_check_branch
          %541 = sbr.rel (%p539) target = $region80
        $region79: #{tpu_custom_call.1} parent=71 // pred_region
          %542 = dma.done %s535, 128
        $region80: #{tpu_custom_call.1} parent=71 // pred_fallthru
          _
        %s543 = sand.u32 %s40, 1
        %s544 = scalar_lea.sflag [#allocation6], %s543
        %s545 = sand.u32 %s100, 1
        %s546 = smul.addr %s545, 8
        %s547 = scalar_lea.vmem [#allocation7], %s546
        // Predicated region
        $region81: #{tpu_custom_call.1} parent=71 // pred_check
          %p548 = pneg %p113
        $region82: #{tpu_custom_call.1} parent=71 // pred_check_branch
          %550 = sbr.rel (%p548) target = $region84
        $region83: #{tpu_custom_call.1} parent=71 // pred_region
          %551 = dma.done %s544, 128
        $region84: #{tpu_custom_call.1} parent=71 // pred_fallthru
          _
        // Predicated region
        $region85: #{tpu_custom_call.1} parent=71 // pred_check
          %p552 = pneg %p134
        $region86: #{tpu_custom_call.1} parent=71 // pred_check_branch
          %554 = sbr.rel (%p552) target = $region88
        $region87: #{tpu_custom_call.1} parent=71 // pred_region
          %555 = dma.done [#allocation9], 512
        $region88: #{tpu_custom_call.1} parent=71 // pred_fallthru
          _
        // Predicated region
        $region89: #{tpu_custom_call.1} parent=71 // pred_check
          %p556 = pneg %p176
        $region90: #{tpu_custom_call.1} parent=71 // pred_check_branch
          %558 = sbr.rel (%p556) target = $region92
        $region91: #{tpu_custom_call.1} parent=71 // pred_region
          %559 = dma.done [#allocation9], 512
        $region92: #{tpu_custom_call.1} parent=71 // pred_fallthru
          _
        // Predicated region
        $region93: #{tpu_custom_call.1} parent=71 // pred_check
          %p560 = pneg %p218
        $region94: #{tpu_custom_call.1} parent=71 // pred_check_branch
          %562 = sbr.rel (%p560) target = $region96
        $region95: #{tpu_custom_call.1} parent=71 // pred_region
          %563 = dma.done [#allocation12], 512
        $region96: #{tpu_custom_call.1} parent=71 // pred_fallthru
          _
        // Predicated region
        $region97: #{tpu_custom_call.1} parent=71 // pred_check
          %p564 = pneg %p260
        $region98: #{tpu_custom_call.1} parent=71 // pred_check_branch
          %566 = sbr.rel (%p564) target = $region100
        $region99: #{tpu_custom_call.1} parent=71 // pred_region
          %567 = dma.done [#allocation12], 512
        $region100: #{tpu_custom_call.1} parent=71 // pred_fallthru
          _
        %s568 = sand.u32 %s48, 1
        %s569 = scalar_lea.sflag [#allocation3], %s568
        %s570 = sand.u32 %s48, 1
        %s571 = smul.addr %s570, 8
        %s572 = scalar_lea.vmem [#allocation2], %s571
        %p573 = pneg %p61
        %p574 = pneg %p58
        %s575 = sand.u32 %s40, 1
        %s576 = scalar_lea.sflag [#allocation6], %s575
        %s577 = sand.u32 %s74, 1
        %s578 = smul.addr %s577, 8
        %s579 = scalar_lea.vmem [#allocation5], %s578
        %p580 = pneg %p87
        %p581 = pneg %p84
        %s582 = sand.u32 %s40, 1
        %s583 = scalar_lea.sflag [#allocation6], %s582
        %s584 = sand.u32 %s100, 1
        %s585 = smul.addr %s584, 8
        %s586 = scalar_lea.vmem [#allocation7], %s585
        %p587 = pneg %p113
        %p588 = pneg %p110
        %p589 = pneg %p134
        %p590 = pneg %p131
        %p591 = pneg %p155
        %p592 = pneg %p152
        %p593 = pneg %p176
        %p594 = pneg %p173
        %p595 = pneg %p197
        %p596 = pneg %p194
        %p597 = pneg %p218
        %p598 = pneg %p215
        %p599 = pneg %p239
        %p600 = pneg %p236
        %p601 = pneg %p260
        %p602 = pneg %p257
        %p603 = pneg %p281
        %p604 = pneg %p278
        %p605 = pneg %p302
        %p606 = pneg %p299
        %p607 = pneg %p323
        %p608 = pneg %p320
        %p609 = pneg %p349
        %p610 = pneg %p346
        %s611 = sand.u32 %s336, 1
        %s612 = scalar_lea.sflag [#allocation4], %s611
        %s613 = sand.u32 %s336, 1
        %s614 = smul.addr %s613, 8
        %s615 = scalar_lea.vmem [#allocation14], %s614
        %p616 = pneg %p375
        %p617 = pneg %p372
        %s618 = sand.u32 %s362, 1
        %s619 = scalar_lea.sflag [#allocation16], %s618
        %s620 = sand.u32 %s362, 1
        %s621 = smul.addr %s620, 16
        %s622 = scalar_lea.vmem [#allocation15], %s621
        %v623 = vld [vmem:[%s529] sm:$0xff]
        %v624 = vld [vmem:[%s538] sm:$0xff]
        %v625 = vld [vmem:[%s547] sm:$0xff]
        %v626 = vld [vmem:[#allocation8] sm:$0xff]
        %v627 = vld [vmem:[#allocation8 + $0x8] sm:$0xff]
        %v628 = vld [vmem:[#allocation8 + $0x10] sm:$0xff]
        %v629 = vld [vmem:[#allocation8 + $0x18] sm:$0xff]
        %v630 = vld [vmem:[%s4] sm:$0x1]
        %v632 = vlaneseq
        %v633 = vshrl.u32 %v632, 7
        %v634 = vsub.s32 0, %v633
        %v635 = vrot.slane %v630, %v634
        %vm637 = vcmask 261120
        %v639 = vsel %vm637, %v623, 0
        %v642 = vsel %vm637, %v626, 0
        %v645 = vsel %vm637, %v627, 0
        %v648 = vsel %vm637, %v628, 0
        %v651 = vsel %vm637, %v629, 0
        %653 = vmatprep.subr.mxu0 0.0
        %654 = vmatpush1.xpose.msra.mxu0 0.0
        %655 = vmatprep.subr.mxu0 0.0
        %656 = vmatpush1.xpose.msra.mxu0 0.0
        %657 = vmatprep.subr.mxu0 0.0
        %658 = vmatpush1.xpose.msra.mxu0 0.0
        %659 = vmatprep.subr.mxu0 0.0
        %660 = vmatpush1.xpose.msra.mxu0 0.0
        %661 = vmatprep.subr.mxu0 0.0
        %662 = vmatpush1.xpose.msra.mxu0 0.0
        %663 = vmatprep.subr.mxu0 0.0
        %664 = vmatpush1.xpose.msra.mxu0 0.0
        %665 = vmatprep.subr.mxu0 0.0
        %666 = vmatpush1.xpose.msra.mxu0 0.0
        %667 = vmatprep.subr.mxu0 0.0
        %668 = vmatpush1.xpose.msra.mxu0 0.0
        %669 = vmatprep.subr.mxu0 0.0
        %670 = vmatpush1.xpose.msra.mxu0 0.0
        %671 = vmatprep.subr.mxu0 0.0
        %672 = vmatpush1.xpose.msra.mxu0 0.0
        %673 = vmatprep.subr.mxu0 0.0
        %674 = vmatpush1.xpose.msra.mxu0 0.0
        %675 = vmatprep.subr.mxu0 0.0
        %676 = vmatpush1.xpose.msra.mxu0 0.0
        %677 = vmatprep.subr.mxu0 0.0
        %678 = vmatpush1.xpose.msra.mxu0 %v651
        %679 = vmatprep.subr.mxu0 0.0
        %680 = vmatpush1.xpose.msra.mxu0 %v648
        %681 = vmatprep.subr.mxu0 0.0
        %682 = vmatpush1.xpose.msra.mxu0 %v645
        %683 = vmatprep.subr.mxu0 0.0
        %684 = vmatpush1.xpose.msra.mxu0 %v642
        %685 = vmatprep.subr.mxu0 0.0
        %686 = vmatpush2.xpose.msra.mxu0 0.0
        %687 = vmatprep.subr.mxu0 0.0
        %688 = vmatpush2.xpose.msra.mxu0 0.0
        %689 = vmatprep.subr.mxu0 0.0
        %690 = vmatpush2.xpose.msra.mxu0 0.0
        %691 = vmatprep.subr.mxu0 0.0
        %692 = vmatpush2.xpose.msra.mxu0 0.0
        %693 = vmatprep.subr.mxu0 0.0
        %694 = vmatpush2.xpose.msra.mxu0 0.0
        %695 = vmatprep.subr.mxu0 0.0
        %696 = vmatpush2.xpose.msra.mxu0 0.0
        %697 = vmatprep.subr.mxu0 0.0
        %698 = vmatpush2.xpose.msra.mxu0 0.0
        %699 = vmatprep.subr.mxu0 0.0
        %700 = vmatpush2.xpose.msra.mxu0 0.0
        %701 = vmatprep.subr.mxu0 0.0
        %702 = vmatpush2.xpose.msra.mxu0 0.0
        %703 = vmatprep.subr.mxu0 0.0
        %704 = vmatpush2.xpose.msra.mxu0 0.0
        %705 = vmatprep.subr.mxu0 0.0
        %706 = vmatpush2.xpose.msra.mxu0 0.0
        %707 = vmatprep.subr.mxu0 0.0
        %708 = vmatpush2.xpose.msra.mxu0 0.0
        %709 = vmatprep.subr.mxu0 0.0
        %710 = vmatpush2.xpose.msra.mxu0 0.0
        %711 = vmatprep.subr.mxu0 0.0
        %712 = vmatpush2.xpose.msra.mxu0 0.0
        %713 = vmatprep.subr.mxu0 0.0
        %714 = vmatpush2.xpose.msra.mxu0 0.0
        %715 = vmatprep.subr.mxu0 0.0
        %716 = vmatpush2.xpose.msra.mxu0 0.0
        %717 = vmatprep.mubr.f32.mxu0 0.0
        %718 = vmatmul.mubr.f32.gmra.mxu0 %v639
        %v719 = vpop.f32.mrf.mxu0
        %v720 = vadd.f32 %v635, %v719
        %v721 = vpop.f32.mrf.mxu0
        %722 = vdwg.mxu0
        %v723 = vld [vmem:[#allocation10] sm:$0xff]
        %v724 = vld [vmem:[#allocation10 + $0x8] sm:$0xff]
        %v725 = vld [vmem:[#allocation10 + $0x10] sm:$0xff]
        %v726 = vld [vmem:[#allocation10 + $0x18] sm:$0xff]
        %v727 = vld [vmem:[%s6] sm:$0x1]
        %v729 = vlaneseq
        %v730 = vshrl.u32 %v729, 7
        %v731 = vsub.s32 0, %v730
        %v732 = vrot.slane %v727, %v731
        %v735 = vsel %vm637, %v624, 0
        %v738 = vsel %vm637, %v723, 0
        %v741 = vsel %vm637, %v724, 0
        %v744 = vsel %vm637, %v725, 0
        %v747 = vsel %vm637, %v726, 0
        %749 = vmatprep.subr.mxu0 0.0
        %750 = vmatpush1.xpose.msra.mxu0 0.0
        %751 = vmatprep.subr.mxu0 0.0
        %752 = vmatpush1.xpose.msra.mxu0 0.0
        %753 = vmatprep.subr.mxu0 0.0
        %754 = vmatpush1.xpose.msra.mxu0 0.0
        %755 = vmatprep.subr.mxu0 0.0
        %756 = vmatpush1.xpose.msra.mxu0 0.0
        %757 = vmatprep.subr.mxu0 0.0
        %758 = vmatpush1.xpose.msra.mxu0 0.0
        %759 = vmatprep.subr.mxu0 0.0
        %760 = vmatpush1.xpose.msra.mxu0 0.0
        %761 = vmatprep.subr.mxu0 0.0
        %762 = vmatpush1.xpose.msra.mxu0 0.0
        %763 = vmatprep.subr.mxu0 0.0
        %764 = vmatpush1.xpose.msra.mxu0 0.0
        %765 = vmatprep.subr.mxu0 0.0
        %766 = vmatpush1.xpose.msra.mxu0 0.0
        %767 = vmatprep.subr.mxu0 0.0
        %768 = vmatpush1.xpose.msra.mxu0 0.0
        %769 = vmatprep.subr.mxu0 0.0
        %770 = vmatpush1.xpose.msra.mxu0 0.0
        %771 = vmatprep.subr.mxu0 0.0
        %772 = vmatpush1.xpose.msra.mxu0 0.0
        %773 = vmatprep.subr.mxu0 0.0
        %774 = vmatpush1.xpose.msra.mxu0 %v747
        %775 = vmatprep.subr.mxu0 0.0
        %776 = vmatpush1.xpose.msra.mxu0 %v744
        %777 = vmatprep.subr.mxu0 0.0
        %778 = vmatpush1.xpose.msra.mxu0 %v741
        %779 = vmatprep.subr.mxu0 0.0
        %780 = vmatpush1.xpose.msra.mxu0 %v738
        %781 = vmatprep.subr.mxu0 0.0
        %782 = vmatpush2.xpose.msra.mxu0 0.0
        %783 = vmatprep.subr.mxu0 0.0
        %784 = vmatpush2.xpose.msra.mxu0 0.0
        %785 = vmatprep.subr.mxu0 0.0
        %786 = vmatpush2.xpose.msra.mxu0 0.0
        %787 = vmatprep.subr.mxu0 0.0
        %788 = vmatpush2.xpose.msra.mxu0 0.0
        %789 = vmatprep.subr.mxu0 0.0
        %790 = vmatpush2.xpose.msra.mxu0 0.0
        %791 = vmatprep.subr.mxu0 0.0
        %792 = vmatpush2.xpose.msra.mxu0 0.0
        %793 = vmatprep.subr.mxu0 0.0
        %794 = vmatpush2.xpose.msra.mxu0 0.0
        %795 = vmatprep.subr.mxu0 0.0
        %796 = vmatpush2.xpose.msra.mxu0 0.0
        %797 = vmatprep.subr.mxu0 0.0
        %798 = vmatpush2.xpose.msra.mxu0 0.0
        %799 = vmatprep.subr.mxu0 0.0
        %800 = vmatpush2.xpose.msra.mxu0 0.0
        %801 = vmatprep.subr.mxu0 0.0
        %802 = vmatpush2.xpose.msra.mxu0 0.0
        %803 = vmatprep.subr.mxu0 0.0
        %804 = vmatpush2.xpose.msra.mxu0 0.0
        %805 = vmatprep.subr.mxu0 0.0
        %806 = vmatpush2.xpose.msra.mxu0 0.0
        %807 = vmatprep.subr.mxu0 0.0
        %808 = vmatpush2.xpose.msra.mxu0 0.0
        %809 = vmatprep.subr.mxu0 0.0
        %810 = vmatpush2.xpose.msra.mxu0 0.0
        %811 = vmatprep.subr.mxu0 0.0
        %812 = vmatpush2.xpose.msra.mxu0 0.0
        %813 = vmatprep.mubr.f32.mxu0 0.0
        %814 = vmatmul.mubr.f32.gmra.mxu0 %v735
        %v815 = vpop.f32.mrf.mxu0
        %v816 = vadd.f32 %v732, %v815
        %v817 = vpop.f32.mrf.mxu0
        %818 = vdwg.mxu0
        %v819 = vld [vmem:[#allocation11] sm:$0xff]
        %v820 = vld [vmem:[#allocation11 + $0x8] sm:$0xff]
        %v821 = vld [vmem:[#allocation11 + $0x10] sm:$0xff]
        %v822 = vld [vmem:[#allocation11 + $0x18] sm:$0xff]
        %v823 = vld [vmem:[%s8] sm:$0x1]
        %v825 = vlaneseq
        %v826 = vshrl.u32 %v825, 7
        %v827 = vsub.s32 0, %v826
        %v828 = vrot.slane %v823, %v827
        %v831 = vsel %vm637, %v625, 0
        %v834 = vsel %vm637, %v819, 0
        %v837 = vsel %vm637, %v820, 0
        %v840 = vsel %vm637, %v821, 0
        %v843 = vsel %vm637, %v822, 0
        %845 = vmatprep.subr.mxu0 0.0
        %846 = vmatpush1.xpose.msra.mxu0 0.0
        %847 = vmatprep.subr.mxu0 0.0
        %848 = vmatpush1.xpose.msra.mxu0 0.0
        %849 = vmatprep.subr.mxu0 0.0
        %850 = vmatpush1.xpose.msra.mxu0 0.0
        %851 = vmatprep.subr.mxu0 0.0
        %852 = vmatpush1.xpose.msra.mxu0 0.0
        %853 = vmatprep.subr.mxu0 0.0
        %854 = vmatpush1.xpose.msra.mxu0 0.0
        %855 = vmatprep.subr.mxu0 0.0
        %856 = vmatpush1.xpose.msra.mxu0 0.0
        %857 = vmatprep.subr.mxu0 0.0
        %858 = vmatpush1.xpose.msra.mxu0 0.0
        %859 = vmatprep.subr.mxu0 0.0
        %860 = vmatpush1.xpose.msra.mxu0 0.0
        %861 = vmatprep.subr.mxu0 0.0
        %862 = vmatpush1.xpose.msra.mxu0 0.0
        %863 = vmatprep.subr.mxu0 0.0
        %864 = vmatpush1.xpose.msra.mxu0 0.0
        %865 = vmatprep.subr.mxu0 0.0
        %866 = vmatpush1.xpose.msra.mxu0 0.0
        %867 = vmatprep.subr.mxu0 0.0
        %868 = vmatpush1.xpose.msra.mxu0 0.0
        %869 = vmatprep.subr.mxu0 0.0
        %870 = vmatpush1.xpose.msra.mxu0 %v843
        %871 = vmatprep.subr.mxu0 0.0
        %872 = vmatpush1.xpose.msra.mxu0 %v840
        %873 = vmatprep.subr.mxu0 0.0
        %874 = vmatpush1.xpose.msra.mxu0 %v837
        %875 = vmatprep.subr.mxu0 0.0
        %876 = vmatpush1.xpose.msra.mxu0 %v834
        %877 = vmatprep.subr.mxu0 0.0
        %878 = vmatpush2.xpose.msra.mxu0 0.0
        %879 = vmatprep.subr.mxu0 0.0
        %880 = vmatpush2.xpose.msra.mxu0 0.0
        %881 = vmatprep.subr.mxu0 0.0
        %882 = vmatpush2.xpose.msra.mxu0 0.0
        %883 = vmatprep.subr.mxu0 0.0
        %884 = vmatpush2.xpose.msra.mxu0 0.0
        %885 = vmatprep.subr.mxu0 0.0
        %886 = vmatpush2.xpose.msra.mxu0 0.0
        %887 = vmatprep.subr.mxu0 0.0
        %888 = vmatpush2.xpose.msra.mxu0 0.0
        %889 = vmatprep.subr.mxu0 0.0
        %890 = vmatpush2.xpose.msra.mxu0 0.0
        %891 = vmatprep.subr.mxu0 0.0
        %892 = vmatpush2.xpose.msra.mxu0 0.0
        %893 = vmatprep.subr.mxu0 0.0
        %894 = vmatpush2.xpose.msra.mxu0 0.0
        %895 = vmatprep.subr.mxu0 0.0
        %896 = vmatpush2.xpose.msra.mxu0 0.0
        %897 = vmatprep.subr.mxu0 0.0
        %898 = vmatpush2.xpose.msra.mxu0 0.0
        %899 = vmatprep.subr.mxu0 0.0
        %900 = vmatpush2.xpose.msra.mxu0 0.0
        %901 = vmatprep.subr.mxu0 0.0
        %902 = vmatpush2.xpose.msra.mxu0 0.0
        %903 = vmatprep.subr.mxu0 0.0
        %904 = vmatpush2.xpose.msra.mxu0 0.0
        %905 = vmatprep.subr.mxu0 0.0
        %906 = vmatpush2.xpose.msra.mxu0 0.0
        %907 = vmatprep.subr.mxu0 0.0
        %908 = vmatpush2.xpose.msra.mxu0 0.0
        %909 = vmatprep.mubr.f32.mxu0 0.0
        %910 = vmatmul.mubr.f32.gmra.mxu0 %v831
        %v911 = vpop.f32.mrf.mxu0
        %v912 = vadd.f32 %v828, %v911
        %v913 = vpop.f32.mrf.mxu0
        %914 = vdwg.mxu0
        %vm915 = vcmask 130048
        %v917 = vsel %vm915, %v720, 0
        %v920 = vsel %vm915, %v816, 0
        %922 = vmatprep.subr.mxu0 0.0
        %923 = vmatpush1.xpose.msra.mxu0 0.0
        %924 = vmatprep.subr.mxu0 0.0
        %925 = vmatpush1.xpose.msra.mxu0 0.0
        %926 = vmatprep.subr.mxu0 0.0
        %927 = vmatpush1.xpose.msra.mxu0 0.0
        %928 = vmatprep.subr.mxu0 0.0
        %929 = vmatpush1.xpose.msra.mxu0 0.0
        %930 = vmatprep.subr.mxu0 0.0
        %931 = vmatpush1.xpose.msra.mxu0 0.0
        %932 = vmatprep.subr.mxu0 0.0
        %933 = vmatpush1.xpose.msra.mxu0 0.0
        %934 = vmatprep.subr.mxu0 0.0
        %935 = vmatpush1.xpose.msra.mxu0 0.0
        %936 = vmatprep.subr.mxu0 0.0
        %937 = vmatpush1.xpose.msra.mxu0 0.0
        %938 = vmatprep.subr.mxu0 0.0
        %939 = vmatpush1.xpose.msra.mxu0 0.0
        %940 = vmatprep.subr.mxu0 0.0
        %941 = vmatpush1.xpose.msra.mxu0 0.0
        %942 = vmatprep.subr.mxu0 0.0
        %943 = vmatpush1.xpose.msra.mxu0 0.0
        %944 = vmatprep.subr.mxu0 0.0
        %945 = vmatpush1.xpose.msra.mxu0 0.0
        %946 = vmatprep.subr.mxu0 0.0
        %947 = vmatpush1.xpose.msra.mxu0 0.0
        %948 = vmatprep.subr.mxu0 0.0
        %949 = vmatpush1.xpose.msra.mxu0 0.0
        %950 = vmatprep.subr.mxu0 0.0
        %951 = vmatpush1.xpose.msra.mxu0 0.0
        %952 = vmatprep.subr.mxu0 0.0
        %953 = vmatpush1.xpose.msra.mxu0 %v920
        %954 = vmatprep.subr.mxu0 0.0
        %955 = vmatpush2.xpose.msra.mxu0 0.0
        %956 = vmatprep.subr.mxu0 0.0
        %957 = vmatpush2.xpose.msra.mxu0 0.0
        %958 = vmatprep.subr.mxu0 0.0
        %959 = vmatpush2.xpose.msra.mxu0 0.0
        %960 = vmatprep.subr.mxu0 0.0
        %961 = vmatpush2.xpose.msra.mxu0 0.0
        %962 = vmatprep.subr.mxu0 0.0
        %963 = vmatpush2.xpose.msra.mxu0 0.0
        %964 = vmatprep.subr.mxu0 0.0
        %965 = vmatpush2.xpose.msra.mxu0 0.0
        %966 = vmatprep.subr.mxu0 0.0
        %967 = vmatpush2.xpose.msra.mxu0 0.0
        %968 = vmatprep.subr.mxu0 0.0
        %969 = vmatpush2.xpose.msra.mxu0 0.0
        %970 = vmatprep.subr.mxu0 0.0
        %971 = vmatpush2.xpose.msra.mxu0 0.0
        %972 = vmatprep.subr.mxu0 0.0
        %973 = vmatpush2.xpose.msra.mxu0 0.0
        %974 = vmatprep.subr.mxu0 0.0
        %975 = vmatpush2.xpose.msra.mxu0 0.0
        %976 = vmatprep.subr.mxu0 0.0
        %977 = vmatpush2.xpose.msra.mxu0 0.0
        %978 = vmatprep.subr.mxu0 0.0
        %979 = vmatpush2.xpose.msra.mxu0 0.0
        %980 = vmatprep.subr.mxu0 0.0
        %981 = vmatpush2.xpose.msra.mxu0 0.0
        %982 = vmatprep.subr.mxu0 0.0
        %983 = vmatpush2.xpose.msra.mxu0 0.0
        %984 = vmatprep.subr.mxu0 0.0
        %985 = vmatpush2.xpose.msra.mxu0 0.0
        %986 = vmatprep.mubr.f32.mxu0 0.0
        %987 = vmatmul.mubr.f32.gmra.mxu0 %v917
        %v988 = vpop.f32.mrf.mxu0
        %v989 = vadd.f32 0.0, %v988
        %v990 = vpop.f32.mrf.mxu0
        %991 = vdwg.mxu0
        %v992 = vmul.f32 %v989, 0.25
        %vm993 = vcmask 64512
        %v994 = vsel %vm993, %v992, -inf
        %995 = vmax.xlane.f32.xlu0 %v994
        %v996 = vpop.xlane.xlu0 %995
        %v997 = vsub.f32 %v992, %v996
        %v998 = vmul.f32 %v997, 1.442695
        %v999 = vpow.pop %v998
        %v1000 = vsel %vm993, %v999, 0.0
        %1001 = vadd.xlane.f32.xlu0 %v1000
        %v1002 = vpop.xlane.xlu0 %1001
        %v1003 = vrcp.pop %v1002
        %v1004 = vmul.f32 %v999, %v1003
        %1005 = vst.msk [vmem:[%s622] sm:$0xff] %vm993, %v1004
        %v1007 = vsel %vm993, %v1004, 0
        %1009 = vmatprep.subr.mxu0 0.0
        %1010 = vmatpush1.msra.mxu0 0.0
        %1011 = vmatprep.subr.mxu0 0.0
        %1012 = vmatpush1.msra.mxu0 0.0
        %1013 = vmatprep.subr.mxu0 0.0
        %1014 = vmatpush1.msra.mxu0 0.0
        %1015 = vmatprep.subr.mxu0 0.0
        %1016 = vmatpush1.msra.mxu0 0.0
        %1017 = vmatprep.subr.mxu0 0.0
        %1018 = vmatpush1.msra.mxu0 0.0
        %1019 = vmatprep.subr.mxu0 0.0
        %1020 = vmatpush1.msra.mxu0 0.0
        %1021 = vmatprep.subr.mxu0 0.0
        %1022 = vmatpush1.msra.mxu0 0.0
        %1023 = vmatprep.subr.mxu0 0.0
        %1024 = vmatpush1.msra.mxu0 0.0
        %1025 = vmatprep.subr.mxu0 0.0
        %1026 = vmatpush1.msra.mxu0 0.0
        %1027 = vmatprep.subr.mxu0 0.0
        %1028 = vmatpush1.msra.mxu0 0.0
        %1029 = vmatprep.subr.mxu0 0.0
        %1030 = vmatpush1.msra.mxu0 0.0
        %1031 = vmatprep.subr.mxu0 0.0
        %1032 = vmatpush1.msra.mxu0 0.0
        %1033 = vmatprep.subr.mxu0 0.0
        %1034 = vmatpush1.msra.mxu0 0.0
        %1035 = vmatprep.subr.mxu0 0.0
        %1036 = vmatpush1.msra.mxu0 0.0
        %1037 = vmatprep.subr.mxu0 0.0
        %1038 = vmatpush1.msra.mxu0 0.0
        %1039 = vmatprep.subr.mxu0 0.0
        %1040 = vmatpush1.msra.mxu0 %v912
        %1041 = vmatprep.subr.mxu0 0.0
        %1042 = vmatpush2.msra.mxu0 0.0
        %1043 = vmatprep.subr.mxu0 0.0
        %1044 = vmatpush2.msra.mxu0 0.0
        %1045 = vmatprep.subr.mxu0 0.0
        %1046 = vmatpush2.msra.mxu0 0.0
        %1047 = vmatprep.subr.mxu0 0.0
        %1048 = vmatpush2.msra.mxu0 0.0
        %1049 = vmatprep.subr.mxu0 0.0
        %1050 = vmatpush2.msra.mxu0 0.0
        %1051 = vmatprep.subr.mxu0 0.0
        %1052 = vmatpush2.msra.mxu0 0.0
        %1053 = vmatprep.subr.mxu0 0.0
        %1054 = vmatpush2.msra.mxu0 0.0
        %1055 = vmatprep.subr.mxu0 0.0
        %1056 = vmatpush2.msra.mxu0 0.0
        %1057 = vmatprep.subr.mxu0 0.0
        %1058 = vmatpush2.msra.mxu0 0.0
        %1059 = vmatprep.subr.mxu0 0.0
        %1060 = vmatpush2.msra.mxu0 0.0
        %1061 = vmatprep.subr.mxu0 0.0
        %1062 = vmatpush2.msra.mxu0 0.0
        %1063 = vmatprep.subr.mxu0 0.0
        %1064 = vmatpush2.msra.mxu0 0.0
        %1065 = vmatprep.subr.mxu0 0.0
        %1066 = vmatpush2.msra.mxu0 0.0
        %1067 = vmatprep.subr.mxu0 0.0
        %1068 = vmatpush2.msra.mxu0 0.0
        %1069 = vmatprep.subr.mxu0 0.0
        %1070 = vmatpush2.msra.mxu0 0.0
        %1071 = vmatprep.subr.mxu0 0.0
        %1072 = vmatpush2.msra.mxu0 0.0
        %1073 = vmatprep.mubr.f32.mxu0 0.0
        %1074 = vmatmul.mubr.f32.gmra.mxu0 %v1007
        %v1075 = vpop.f32.mrf.mxu0
        %v1076 = vadd.f32 0.0, %v1075
        %v1077 = vpop.f32.mrf.mxu0
        %1078 = vdwg.mxu0
        %1079 = vrot.lane.b32.xlu0 %v720, 112
        %v1080 = vpop.permute.xlu0 %1079
        %1081 = vrot.lane.b32.xlu0 %v816, 112
        %v1082 = vpop.permute.xlu0 %1081
        %v1083 = vsel %vm915, %v1080, 0
        %v1085 = vsel %vm915, %v1082, 0
        %1087 = vmatprep.subr.mxu0 0.0
        %1088 = vmatpush1.xpose.msra.mxu0 0.0
        %1089 = vmatprep.subr.mxu0 0.0
        %1090 = vmatpush1.xpose.msra.mxu0 0.0
        %1091 = vmatprep.subr.mxu0 0.0
        %1092 = vmatpush1.xpose.msra.mxu0 0.0
        %1093 = vmatprep.subr.mxu0 0.0
        %1094 = vmatpush1.xpose.msra.mxu0 0.0
        %1095 = vmatprep.subr.mxu0 0.0
        %1096 = vmatpush1.xpose.msra.mxu0 0.0
        %1097 = vmatprep.subr.mxu0 0.0
        %1098 = vmatpush1.xpose.msra.mxu0 0.0
        %1099 = vmatprep.subr.mxu0 0.0
        %1100 = vmatpush1.xpose.msra.mxu0 0.0
        %1101 = vmatprep.subr.mxu0 0.0
        %1102 = vmatpush1.xpose.msra.mxu0 0.0
        %1103 = vmatprep.subr.mxu0 0.0
        %1104 = vmatpush1.xpose.msra.mxu0 0.0
        %1105 = vmatprep.subr.mxu0 0.0
        %1106 = vmatpush1.xpose.msra.mxu0 0.0
        %1107 = vmatprep.subr.mxu0 0.0
        %1108 = vmatpush1.xpose.msra.mxu0 0.0
        %1109 = vmatprep.subr.mxu0 0.0
        %1110 = vmatpush1.xpose.msra.mxu0 0.0
        %1111 = vmatprep.subr.mxu0 0.0
        %1112 = vmatpush1.xpose.msra.mxu0 0.0
        %1113 = vmatprep.subr.mxu0 0.0
        %1114 = vmatpush1.xpose.msra.mxu0 0.0
        %1115 = vmatprep.subr.mxu0 0.0
        %1116 = vmatpush1.xpose.msra.mxu0 0.0
        %1117 = vmatprep.subr.mxu0 0.0
        %1118 = vmatpush1.xpose.msra.mxu0 %v1085
        %1119 = vmatprep.subr.mxu0 0.0
        %1120 = vmatpush2.xpose.msra.mxu0 0.0
        %1121 = vmatprep.subr.mxu0 0.0
        %1122 = vmatpush2.xpose.msra.mxu0 0.0
        %1123 = vmatprep.subr.mxu0 0.0
        %1124 = vmatpush2.xpose.msra.mxu0 0.0
        %1125 = vmatprep.subr.mxu0 0.0
        %1126 = vmatpush2.xpose.msra.mxu0 0.0
        %1127 = vmatprep.subr.mxu0 0.0
        %1128 = vmatpush2.xpose.msra.mxu0 0.0
        %1129 = vmatprep.subr.mxu0 0.0
        %1130 = vmatpush2.xpose.msra.mxu0 0.0
        %1131 = vmatprep.subr.mxu0 0.0
        %1132 = vmatpush2.xpose.msra.mxu0 0.0
        %1133 = vmatprep.subr.mxu0 0.0
        %1134 = vmatpush2.xpose.msra.mxu0 0.0
        %1135 = vmatprep.subr.mxu0 0.0
        %1136 = vmatpush2.xpose.msra.mxu0 0.0
        %1137 = vmatprep.subr.mxu0 0.0
        %1138 = vmatpush2.xpose.msra.mxu0 0.0
        %1139 = vmatprep.subr.mxu0 0.0
        %1140 = vmatpush2.xpose.msra.mxu0 0.0
        %1141 = vmatprep.subr.mxu0 0.0
        %1142 = vmatpush2.xpose.msra.mxu0 0.0
        %1143 = vmatprep.subr.mxu0 0.0
        %1144 = vmatpush2.xpose.msra.mxu0 0.0
        %1145 = vmatprep.subr.mxu0 0.0
        %1146 = vmatpush2.xpose.msra.mxu0 0.0
        %1147 = vmatprep.subr.mxu0 0.0
        %1148 = vmatpush2.xpose.msra.mxu0 0.0
        %1149 = vmatprep.subr.mxu0 0.0
        %1150 = vmatpush2.xpose.msra.mxu0 0.0
        %1151 = vmatprep.mubr.f32.mxu0 0.0
        %1152 = vmatmul.mubr.f32.gmra.mxu0 %v1083
        %v1153 = vpop.f32.mrf.mxu0
        %v1154 = vadd.f32 0.0, %v1153
        %v1155 = vpop.f32.mrf.mxu0
        %1156 = vdwg.mxu0
        %v1157 = vmul.f32 %v1154, 0.25
        %v1158 = vsel %vm993, %v1157, -inf
        %1159 = vmax.xlane.f32.xlu0 %v1158
        %v1160 = vpop.xlane.xlu0 %1159
        %v1161 = vsub.f32 %v1157, %v1160
        %v1162 = vmul.f32 %v1161, 1.442695
        %v1163 = vpow.pop %v1162
        %v1164 = vsel %vm993, %v1163, 0.0
        %1165 = vadd.xlane.f32.xlu0 %v1164
        %v1166 = vpop.xlane.xlu0 %1165
        %v1167 = vrcp.pop %v1166
        %v1168 = vmul.f32 %v1163, %v1167
        %s1169 = scalar_lea.vmem %s622, 8 [#allocation15]
        %1170 = vst.msk [vmem:[%s1169] sm:$0xff] %vm993, %v1168
        %1172 = vrot.lane.b32.xlu0 %v912, 112
        %v1173 = vpop.permute.xlu0 %1172
        %v1176 = vsel %vm993, %v1168, 0
        %1178 = vmatprep.subr.mxu0 0.0
        %1179 = vmatpush1.msra.mxu0 0.0
        %1180 = vmatprep.subr.mxu0 0.0
        %1181 = vmatpush1.msra.mxu0 0.0
        %1182 = vmatprep.subr.mxu0 0.0
        %1183 = vmatpush1.msra.mxu0 0.0
        %1184 = vmatprep.subr.mxu0 0.0
        %1185 = vmatpush1.msra.mxu0 0.0
        %1186 = vmatprep.subr.mxu0 0.0
        %1187 = vmatpush1.msra.mxu0 0.0
        %1188 = vmatprep.subr.mxu0 0.0
        %1189 = vmatpush1.msra.mxu0 0.0
        %1190 = vmatprep.subr.mxu0 0.0
        %1191 = vmatpush1.msra.mxu0 0.0
        %1192 = vmatprep.subr.mxu0 0.0
        %1193 = vmatpush1.msra.mxu0 0.0
        %1194 = vmatprep.subr.mxu0 0.0
        %1195 = vmatpush1.msra.mxu0 0.0
        %1196 = vmatprep.subr.mxu0 0.0
        %1197 = vmatpush1.msra.mxu0 0.0
        %1198 = vmatprep.subr.mxu0 0.0
        %1199 = vmatpush1.msra.mxu0 0.0
        %1200 = vmatprep.subr.mxu0 0.0
        %1201 = vmatpush1.msra.mxu0 0.0
        %1202 = vmatprep.subr.mxu0 0.0
        %1203 = vmatpush1.msra.mxu0 0.0
        %1204 = vmatprep.subr.mxu0 0.0
        %1205 = vmatpush1.msra.mxu0 0.0
        %1206 = vmatprep.subr.mxu0 0.0
        %1207 = vmatpush1.msra.mxu0 0.0
        %1208 = vmatprep.subr.mxu0 0.0
        %1209 = vmatpush1.msra.mxu0 %v1173
        %1210 = vmatprep.subr.mxu0 0.0
        %1211 = vmatpush2.msra.mxu0 0.0
        %1212 = vmatprep.subr.mxu0 0.0
        %1213 = vmatpush2.msra.mxu0 0.0
        %1214 = vmatprep.subr.mxu0 0.0
        %1215 = vmatpush2.msra.mxu0 0.0
        %1216 = vmatprep.subr.mxu0 0.0
        %1217 = vmatpush2.msra.mxu0 0.0
        %1218 = vmatprep.subr.mxu0 0.0
        %1219 = vmatpush2.msra.mxu0 0.0
        %1220 = vmatprep.subr.mxu0 0.0
        %1221 = vmatpush2.msra.mxu0 0.0
        %1222 = vmatprep.subr.mxu0 0.0
        %1223 = vmatpush2.msra.mxu0 0.0
        %1224 = vmatprep.subr.mxu0 0.0
        %1225 = vmatpush2.msra.mxu0 0.0
        %1226 = vmatprep.subr.mxu0 0.0
        %1227 = vmatpush2.msra.mxu0 0.0
        %1228 = vmatprep.subr.mxu0 0.0
        %1229 = vmatpush2.msra.mxu0 0.0
        %1230 = vmatprep.subr.mxu0 0.0
        %1231 = vmatpush2.msra.mxu0 0.0
        %1232 = vmatprep.subr.mxu0 0.0
        %1233 = vmatpush2.msra.mxu0 0.0
        %1234 = vmatprep.subr.mxu0 0.0
        %1235 = vmatpush2.msra.mxu0 0.0
        %1236 = vmatprep.subr.mxu0 0.0
        %1237 = vmatpush2.msra.mxu0 0.0
        %1238 = vmatprep.subr.mxu0 0.0
        %1239 = vmatpush2.msra.mxu0 0.0
        %1240 = vmatprep.subr.mxu0 0.0
        %1241 = vmatpush2.msra.mxu0 0.0
        %1242 = vmatprep.mubr.f32.mxu0 0.0
        %1243 = vmatmul.mubr.f32.gmra.mxu0 %v1176
        %v1244 = vpop.f32.mrf.mxu0
        %v1245 = vadd.f32 0.0, %v1244
        %v1246 = vpop.f32.mrf.mxu0
        %1247 = vdwg.mxu0
        %1249 = vrot.lane.b32.xlu0 %v1245, 16
        %v1250 = vpop.permute.xlu0 %1249
        %v1252 = vsel %vm915, %v1076, %v1250
        %v1253 = vld [vmem:[#allocation13] sm:$0xff]
        %v1254 = vld [vmem:[#allocation13 + $0x8] sm:$0xff]
        %v1255 = vld [vmem:[#allocation13 + $0x10] sm:$0xff]
        %v1256 = vld [vmem:[#allocation13 + $0x18] sm:$0xff]
        %v1257 = vld [vmem:[%s10] sm:$0x1]
        %v1259 = vlaneseq
        %v1260 = vshrl.u32 %v1259, 7
        %v1261 = vsub.s32 0, %v1260
        %v1262 = vrot.slane %v1257, %v1261
        %v1265 = vsel %vm637, %v1252, 0
        %v1268 = vsel %vm637, %v1253, 0
        %v1271 = vsel %vm637, %v1254, 0
        %v1274 = vsel %vm637, %v1255, 0
        %v1277 = vsel %vm637, %v1256, 0
        %1279 = vmatprep.subr.mxu0 0.0
        %1280 = vmatpush1.xpose.msra.mxu0 0.0
        %1281 = vmatprep.subr.mxu0 0.0
        %1282 = vmatpush1.xpose.msra.mxu0 0.0
        %1283 = vmatprep.subr.mxu0 0.0
        %1284 = vmatpush1.xpose.msra.mxu0 0.0
        %1285 = vmatprep.subr.mxu0 0.0
        %1286 = vmatpush1.xpose.msra.mxu0 0.0
        %1287 = vmatprep.subr.mxu0 0.0
        %1288 = vmatpush1.xpose.msra.mxu0 0.0
        %1289 = vmatprep.subr.mxu0 0.0
        %1290 = vmatpush1.xpose.msra.mxu0 0.0
        %1291 = vmatprep.subr.mxu0 0.0
        %1292 = vmatpush1.xpose.msra.mxu0 0.0
        %1293 = vmatprep.subr.mxu0 0.0
        %1294 = vmatpush1.xpose.msra.mxu0 0.0
        %1295 = vmatprep.subr.mxu0 0.0
        %1296 = vmatpush1.xpose.msra.mxu0 0.0
        %1297 = vmatprep.subr.mxu0 0.0
        %1298 = vmatpush1.xpose.msra.mxu0 0.0
        %1299 = vmatprep.subr.mxu0 0.0
        %1300 = vmatpush1.xpose.msra.mxu0 0.0
        %1301 = vmatprep.subr.mxu0 0.0
        %1302 = vmatpush1.xpose.msra.mxu0 0.0
        %1303 = vmatprep.subr.mxu0 0.0
        %1304 = vmatpush1.xpose.msra.mxu0 %v1277
        %1305 = vmatprep.subr.mxu0 0.0
        %1306 = vmatpush1.xpose.msra.mxu0 %v1274
        %1307 = vmatprep.subr.mxu0 0.0
        %1308 = vmatpush1.xpose.msra.mxu0 %v1271
        %1309 = vmatprep.subr.mxu0 0.0
        %1310 = vmatpush1.xpose.msra.mxu0 %v1268
        %1311 = vmatprep.subr.mxu0 0.0
        %1312 = vmatpush2.xpose.msra.mxu0 0.0
        %1313 = vmatprep.subr.mxu0 0.0
        %1314 = vmatpush2.xpose.msra.mxu0 0.0
        %1315 = vmatprep.subr.mxu0 0.0
        %1316 = vmatpush2.xpose.msra.mxu0 0.0
        %1317 = vmatprep.subr.mxu0 0.0
        %1318 = vmatpush2.xpose.msra.mxu0 0.0
        %1319 = vmatprep.subr.mxu0 0.0
        %1320 = vmatpush2.xpose.msra.mxu0 0.0
        %1321 = vmatprep.subr.mxu0 0.0
        %1322 = vmatpush2.xpose.msra.mxu0 0.0
        %1323 = vmatprep.subr.mxu0 0.0
        %1324 = vmatpush2.xpose.msra.mxu0 0.0
        %1325 = vmatprep.subr.mxu0 0.0
        %1326 = vmatpush2.xpose.msra.mxu0 0.0
        %1327 = vmatprep.subr.mxu0 0.0
        %1328 = vmatpush2.xpose.msra.mxu0 0.0
        %1329 = vmatprep.subr.mxu0 0.0
        %1330 = vmatpush2.xpose.msra.mxu0 0.0
        %1331 = vmatprep.subr.mxu0 0.0
        %1332 = vmatpush2.xpose.msra.mxu0 0.0
        %1333 = vmatprep.subr.mxu0 0.0
        %1334 = vmatpush2.xpose.msra.mxu0 0.0
        %1335 = vmatprep.subr.mxu0 0.0
        %1336 = vmatpush2.xpose.msra.mxu0 0.0
        %1337 = vmatprep.subr.mxu0 0.0
        %1338 = vmatpush2.xpose.msra.mxu0 0.0
        %1339 = vmatprep.subr.mxu0 0.0
        %1340 = vmatpush2.xpose.msra.mxu0 0.0
        %1341 = vmatprep.subr.mxu0 0.0
        %1342 = vmatpush2.xpose.msra.mxu0 0.0
        %1343 = vmatprep.mubr.f32.mxu0 0.0
        %1344 = vmatmul.mubr.f32.gmra.mxu0 %v1265
        %v1345 = vpop.f32.mrf.mxu0
        %v1346 = vadd.f32 %v1262, %v1345
        %v1347 = vpop.f32.mrf.mxu0
        %1348 = vdwg.mxu0
        %v1349 = vadd.f32 %v1346, %v623
        %v1350 = vsel %vm637, %v1349, 0.0
        %1351 = vadd.xlane.f32.xlu0 %v1350
        %v1352 = vpop.xlane.xlu0 %1351
        %v1353 = vrcp.pop 32.0
        %v1354 = vmul.f32 %v1352, %v1353
        %v1355 = vsub.f32 %v1349, %v1354
        %v1356 = vmul.f32 %v1355, %v1355
        %v1357 = vsel %vm637, %v1356, 0.0
        %1358 = vadd.xlane.f32.xlu0 %v1357
        %v1359 = vpop.xlane.xlu0 %1358
        %v1360 = vmul.f32 %v1359, %v1353
        %v1361 = vld [vmem:[%s11] sm:$0x1]
        %v1362 = vadd.f32 %v1360, 1e-05
        %v1363 = vrsqrt.pop %v1362
        %v1364 = vmul.f32 %v1355, %v1363
        %v1366 = vlaneseq
        %v1367 = vshrl.u32 %v1366, 7
        %v1368 = vsub.s32 0, %v1367
        %v1369 = vrot.slane %v1361, %v1368
        %v1371 = vmul.f32 %v1369, %v1364
        %v1372 = vld [vmem:[%s12] sm:$0x1]
        %v1374 = vlaneseq
        %v1375 = vshrl.u32 %v1374, 7
        %v1376 = vsub.s32 0, %v1375
        %v1377 = vrot.slane %v1372, %v1376
        %v1379 = vadd.f32 %v1371, %v1377
        %1380 = vst.msk [vmem:[%s615] sm:$0xff] %vm637, %v1379
        %s1381 = sand.u32 %s336, 1
        %s1382 = scalar_lea.sflag [#allocation4], %s1381
        %s1383 = sand.u32 %s336, 1
        %s1384 = smul.addr %s1383, 8
        %s1385 = scalar_lea.vmem [#allocation14], %s1384
        %s1386 = sand.u32 %s362, 1
        %s1387 = scalar_lea.sflag [#allocation16], %s1386
        %s1388 = sand.u32 %s362, 1
        %s1389 = smul.addr %s1388, 16
        %s1390 = scalar_lea.vmem [#allocation15], %s1389
        // Predicated region
        $region101: #{tpu_custom_call.1} parent=71 // pred_check
          %p1391 = pneg %p346
        $region102: #{tpu_custom_call.1} parent=71 // pred_check_branch
          %1393 = sbr.rel (%p1391) target = $region104
        $region103: #{tpu_custom_call.1} parent=71 // pred_region
          %s1395 = ssub.s32 128, 128
          %1396 = vsyncadd %s1382, %s1395
          %s1397 = smul.addr %s40, 128
          %s1398 = scalar_lea.hbm %s13, %s1397
          %s1400 = sshll.u32 %s1385, 4
          %s1401 = int_to_ptr.vmem [resolvable:$true] %s1400
          %1403 = dma.vmem_to_hbm [thread:$0]  %s1401, 128, %s1398, %s1382
        $region104: #{tpu_custom_call.1} parent=71 // pred_fallthru
          _
        // Predicated region
        $region105: #{tpu_custom_call.1} parent=71 // pred_check
          %p1404 = pneg %p372
        $region106: #{tpu_custom_call.1} parent=71 // pred_check_branch
          %1406 = sbr.rel (%p1404) target = $region108
        $region107: #{tpu_custom_call.1} parent=71 // pred_region
          %s1408 = ssub.s32 256, 256
          %1409 = vsyncadd %s1387, %s1408
          %s1410 = smul.addr %s40, 128
          %s1411 = scalar_lea.hbm %s14, %s1410
          %s1412 = sshll.u32 %s1390, 4
          %s1413 = int_to_ptr.vmem [resolvable:$true] %s1412
          %1418 = dma.vmem_to_hbm [thread:$0]  %s1413, 256, %s1411, %s1387, 128, 256, 8
        $region108: #{tpu_custom_call.1} parent=71 // pred_fallthru
          _
      $region72: #{tpu_custom_call.1} parent=5 // pred_fallthru
        _
      %p1419 = scmp.le.s32.totalorder 2, %s35
      // Predicated region
      $region109: #{tpu_custom_call.1} parent=5 // pred_check
        %p1420 = pneg %p1419
      $region110: #{tpu_custom_call.1} parent=5 // pred_check_branch
        %1422 = sbr.rel (%p1420) target = $region112
      $region111: #{tpu_custom_call.1} parent=5 // pred_region
        %s1423 = ssub.s32 %s35, 2
        // Predicated region
        $region113: #{tpu_custom_call.1} parent=111 // pred_check
          %p1424 = pneg %p352
        $region114: #{tpu_custom_call.1} parent=111 // pred_check_branch
          %1426 = sbr.rel (%p1424) target = $region116
        $region115: #{tpu_custom_call.1} parent=111 // pred_region
          %s1427 = sand.u32 %s337, 1
          %s1428 = scalar_lea.sflag [#allocation4], %s1427
          %s1429 = sand.u32 %s337, 1
          %s1430 = smul.addr %s1429, 8
          %s1431 = scalar_lea.vmem [#allocation14], %s1430
          %1432 = dma.done %s1428, 128
        $region116: #{tpu_custom_call.1} parent=111 // pred_fallthru
          _
        // Predicated region
        $region117: #{tpu_custom_call.1} parent=111 // pred_check
          %p1433 = pneg %p378
        $region118: #{tpu_custom_call.1} parent=111 // pred_check_branch
          %1435 = sbr.rel (%p1433) target = $region120
        $region119: #{tpu_custom_call.1} parent=111 // pred_region
          %s1436 = sand.u32 %s363, 1
          %s1437 = scalar_lea.sflag [#allocation16], %s1436
          %s1438 = sand.u32 %s363, 1
          %s1439 = smul.addr %s1438, 16
          %s1440 = scalar_lea.vmem [#allocation15], %s1439
          %1441 = dma.done %s1437, 256
        $region120: #{tpu_custom_call.1} parent=111 // pred_fallthru
          _
      $region112: #{tpu_custom_call.1} parent=5 // pred_fallthru
        _
    $region6: #{tpu_custom_call.1} parent=1 // loop_footer
      %s39 = sadd.s32 1, %s35
    $region7: #{tpu_custom_call.1} parent=1 // loop_footer_branch
      %34 = sbr.rel target = $region3
    $region8: #{tpu_custom_call.1} parent=1 // loop_exit
      _
    %1442 = vsyncpa [#allocation3], 1
    %s1443 = scalar_lea.sflag [#allocation3], 1
    %1444 = vsyncpa %s1443, 1
    %1445 = vsyncpa [#allocation6], 1
    %s1446 = scalar_lea.sflag [#allocation6], 1
    %1447 = vsyncpa %s1446, 1
    %1448 = vsyncpa [#allocation9], 1
    %1449 = vsyncpa [#allocation12], 1
    %1450 = vsyncpa [#allocation4], 1
    %s1451 = scalar_lea.sflag [#allocation4], 1
    %1452 = vsyncpa %s1451, 1
    %1453 = vsyncpa [#allocation16], 1
    %s1454 = scalar_lea.sflag [#allocation16], 1
    %1455 = vsyncpa %s1454, 1

</llo_original>
